<compile_context>
chip_gen: v7x
topology: tpu7x:2x2x1
jax: 0.10.0
libtpu: 0.0.40
codegen_flags: <defaults>
</compile_context>

<pallas_src>
import functools

import numpy as np
import jax
import jax.numpy as jnp
from jax.experimental import pallas as pl
from jax.experimental.pallas import tpu as pltpu


# --------------------------------- kernel ----------------------------------

def _relpos_kernel(q_ref, relcat_ref, bmask_ref, ecat_ref, o_ref):
    q = q_ref[...]                                            # (G*hw, D)

    # Relative logits for every (query residue, relative offset) pair — MXU.
    lall = jnp.dot(q, relcat_ref[...],
                   preferred_element_type=jnp.float32)        # (G*hw, W^2+H^2)

    # Residue select: one lane-dense 0/1 multiply (the only elementwise work).
    m = bmask_ref[...]                                        # (hw, W^2+H^2)
    g = lall.shape[0] // m.shape[0]
    if g > 1:
        m = jnp.concatenate([m] * g, axis=0)                  # cheap vreg stacking
    lsel = lall * m                                           # (G*hw, W^2+H^2)

    # Fused one-hot expand over the key axis — MXU; no output-sized add.
    out = jnp.dot(lsel, ecat_ref[...],
                  preferred_element_type=jnp.float32)         # (G*hw, TN)
    o_ref[...] = out.astype(o_ref.dtype)


# --------------------------- cached static tables ---------------------------

@functools.lru_cache(maxsize=None)
def _static_tables(height, width):
    """Index/select/expand tables; depend only on (H, W), built once with numpy."""
    H, W = height, width
    hw = H * W
    # Column layout of the fused logits: c = j*W + J (width block, W^2 cols),
    # then c = W^2 + i*H + I (height block, H^2 cols).
    jj = np.repeat(np.arange(W), W)              # j for each width column
    JJ = np.tile(np.arange(W), W)                # J for each width column
    ii = np.repeat(np.arange(H), H)              # i for each height column
    II = np.tile(np.arange(H), H)                # I for each height column
    # rel-row gather indices (rel -> abs shift folded into the table).
    idx_w = (JJ - jj + (W - 1)).astype(np.int32)               # (W^2,)
    idx_h = (II - ii + (H - 1)).astype(np.int32)               # (H^2,)
    # Residue select mask: keep column (j,J) iff query col == j; (i,I) iff row == i.
    p = np.arange(hw)
    bm_w = (p[:, None] % W == jj[None, :]).astype(np.float32)   # (hw, W^2)
    bm_h = (p[:, None] // W == ii[None, :]).astype(np.float32)  # (hw, H^2)
    bmask = np.concatenate([bm_w, bm_h], axis=1)                # (hw, W^2+H^2)
    # One-hot expand over the key axis k = Ik*W + Jk.
    k = np.arange(hw)
    e_w = (JJ[:, None] == (k[None, :] % W)).astype(np.float32)  # (W^2, hw)
    e_h = (II[:, None] == (k[None, :] // W)).astype(np.float32) # (H^2, hw)
    e_cat = np.concatenate([e_w, e_h], axis=0)                  # (W^2+H^2, hw)
    return (jnp.asarray(idx_w), jnp.asarray(idx_h),
            jnp.asarray(bmask), jnp.asarray(e_cat))


# ------------------------- VMEM / tiling heuristics --------------------------

def _round_up(x, m):
    return -(-x // m) * m


def _pad_bytes(rows, cols, itemsize=4):
    """f32 VMEM footprint of a (rows, cols) array rounded up to (8, 128) tiles."""
    return _round_up(max(rows, 1), 8) * _round_up(max(cols, 1), 128) * itemsize


def _vmem_cap_bytes():
    try:
        return int(pltpu.get_tpu_info().vmem_capacity_bytes)
    except Exception:
        return 64 * 2 ** 20          # conservative default (v7x per-TC VMEM)


def _pick_col_tile(hw, max_cols=1024):
    """Output-column tile: full width for small maps, else a 128-multiple divisor."""
    if hw <= max_cols:
        return hw
    start = (min(max_cols, hw) // 128) * 128
    for t in range(start, 127, -128):
        if t > 0 and hw % t == 0:
            return t
    return hw


def _vmem_estimate(g, hw, d, wc, tn, n_col, single_buffer_tables=True):
    rows = g * hw
    est = 2 * _pad_bytes(rows, d)         # q block (double-buffered)
    est += 2 * _pad_bytes(rows, tn)       # out block (double-buffered)
    est += 2 * _pad_bytes(rows, wc)       # in-kernel lall + lsel temporaries
    nb = 1 if single_buffer_tables else 2
    est += nb * (_pad_bytes(d, wc) + _pad_bytes(hw, wc))        # rel_cat + bmask
    est += (nb if n_col == 1 else 2) * _pad_bytes(wc, tn)       # e_cat block(s)
    return est


def _pick_group(bn, hw, d, wc, tn, n_col, budget):
    """Largest divisor G of bn whose padded working set fits `budget`, with the
    grid kept >= 2 steps (v7x megacore); fallback is the SMALLEST legal divisor."""
    legal = [g for g in range(1, bn + 1)
             if bn % g == 0 and ((g * hw) % 8 == 0 or g == bn)]
    if not legal:
        return 1
    cap = bn
    if n_col == 1 and bn >= 2:
        cap = max(1, bn // 2)             # keep both v7x TensorCores busy
    fits = [g for g in legal
            if g <= cap and _vmem_estimate(g, hw, d, wc, tn, n_col) <= budget]
    if fits:
        return max(fits)
    return min(legal)


# -------------------------------- wrapper -----------------------------------

def rel_pos_emb(q, rel_height, rel_width, *, height, width, group_heads=None):
    """q: (B, N, H*W, D); rel_height: (2H-1, D); rel_width: (2W-1, D)."""
    b, n, hw, d = q.shape
    H, W = height, width
    assert hw == H * W
    assert rel_width.shape == (2 * W - 1, d)
    assert rel_height.shape == (2 * H - 1, d)

    bn = b * n
    wc = W * W + H * H
    idx_w, idx_h, bmask, e_cat = _static_tables(H, W)

    # Fused, pre-shifted rel table: one (D, W^2+H^2) RHS for a single q @ rel_cat.
    rel_cat = jnp.concatenate(
        [jnp.take(rel_width, idx_w, axis=0),
         jnp.take(rel_height, idx_h, axis=0)], axis=0).T       # (D, wc)

    tn = _pick_col_tile(hw)
    n_col = hw // tn

    vmem_cap = _vmem_cap_bytes()
    budget = int(0.40 * vmem_cap)
    G = group_heads if group_heads is not None else _pick_group(
        bn, hw, d, wc, tn, n_col, budget)
    assert bn % G == 0
    rows = G * hw

    est = _vmem_estimate(G, hw, d, wc, tn, n_col)
    vmem_limit = int(min(int(0.75 * vmem_cap), max(32 * 2 ** 20, 2 * est)))

    q2 = q.reshape(bn * hw, d)            # lane-friendly 2-D slab (free reshape)

    def _run(single_buffer_tables):
        const_kw = ({"pipeline_mode": pl.Buffered(1)}
                    if single_buffer_tables else {})
        in_specs = [
            pl.BlockSpec((rows, d), lambda s, t: (s, 0)),                 # q block
            pl.BlockSpec((d, wc), lambda s, t: (0, 0), **const_kw),       # rel_cat
            pl.BlockSpec((hw, wc), lambda s, t: (0, 0), **const_kw),      # bmask
            pl.BlockSpec((wc, tn), lambda s, t: (0, t),
                         **(const_kw if n_col == 1 else {})),             # e_cat
        ]
        out_spec = pl.BlockSpec((rows, tn), lambda s, t: (s, t))
        return pl.pallas_call(
            _relpos_kernel,
            out_shape=jax.ShapeDtypeStruct((bn * hw, hw), q.dtype),
            grid_spec=pltpu.PrefetchScalarGridSpec(
                num_scalar_prefetch=0,
                grid=(bn // G, n_col),
                in_specs=in_specs,
                out_specs=out_spec),
            compiler_params=pltpu.CompilerParams(
                dimension_semantics=("parallel", "parallel"),
                vmem_limit_bytes=vmem_limit),
        )(q2, rel_cat, bmask, e_cat)

    try:
        out2 = _run(True)
    except Exception:
        # Fallback if this JAX version rejects pipeline_mode on BlockSpec; the
        # only difference is double- vs single-buffering of the constant tables.
        out2 = _run(False)

    return out2.reshape(b, n, hw, hw)


# ----------------- pure-JAX reference (mirrors the torch code) -----------------

def _rel_to_abs_ref(x):
    b, nh, l, _ = x.shape
    x = jnp.concatenate([x, jnp.zeros((b, nh, l, 1), x.dtype)], axis=3)
    flat_x = x.reshape(b, nh, l * 2 * l)
    flat_x = jnp.concatenate([flat_x, jnp.zeros((b, nh, l - 1), x.dtype)], axis=2)
    final_x = flat_x.reshape(b, nh, l + 1, 2 * l - 1)
    return final_x[:, :, :l, l - 1:]


def _relative_logits_1d_ref(q, rel_k):
    b, n, h, w, _ = q.shape
    logits = jnp.einsum('bnhwd,rd->bnhwr', q, rel_k)
    logits = logits.reshape(b, n * h, w, 2 * w - 1)
    logits = _rel_to_abs_ref(logits)
    logits = logits.reshape(b, n, h, w, w)
    logits = jnp.broadcast_to(logits[:, :, :, None, :, :], (b, n, h, h, w, w))
    return logits


def _forward_ref(q, rel_height, rel_width, *, height, width):
    b, n, _, d = q.shape
    q5 = q.reshape(b, n, height, width, d)
    rlw = _relative_logits_1d_ref(q5, rel_width)                 # 'b n h H w W'
    rlw = rlw.transpose(0, 1, 2, 4, 3, 5).reshape(b, n, height * width, height * width)
    q5t = q5.transpose(0, 1, 3, 2, 4)
    rlh = _relative_logits_1d_ref(q5t, rel_height)               # 'b n w W h H'
    rlh = rlh.transpose(0, 1, 4, 2, 5, 3).reshape(b, n, height * width, height * width)
    return rlw + rlh


if __name__ == "__main__":
    B, N, HEIGHT, WIDTH, D = 2, 4, 8, 8, 32
    key = jax.random.PRNGKey(0)
    kq, kh, kw = jax.random.split(key, 3)
    scale = D ** (-0.5)

    # Deterministic parameter init (same shapes as nn.Parameter in __init__).
    q = jax.random.normal(kq, (B, N, HEIGHT * WIDTH, D), dtype=jnp.float32)
    rel_height = jax.random.normal(kh, (2 * HEIGHT - 1, D), dtype=jnp.float32) * scale
    rel_width = jax.random.normal(kw, (2 * WIDTH - 1, D), dtype=jnp.float32) * scale

    out = rel_pos_emb(q, rel_height, rel_width, height=HEIGHT, width=WIDTH)
    out = jax.block_until_ready(out)

    ref = _forward_ref(q, rel_height, rel_width, height=HEIGHT, width=WIDTH)
    assert out.shape == ref.shape == (B, N, HEIGHT * WIDTH, HEIGHT * WIDTH)
    err = float(jnp.max(jnp.abs(out - ref)))
    assert jnp.allclose(out, ref, atol=1e-4, rtol=1e-4), err

    print("KERNEL_OK")
</pallas_src>

<mosaic_0001>
module attributes {stable_mosaic.version = 11 : i64} {
  func.func @_relpos_kernel(%arg0: i32, %arg1: i32, %arg2: memref<256x32xf32, #tpu.memory_space<vmem>>, %arg3: memref<32x128xf32, #tpu.memory_space<vmem>>, %arg4: memref<64x128xf32, #tpu.memory_space<vmem>>, %arg5: memref<128x64xf32, #tpu.memory_space<vmem>>, %arg6: memref<256x64xf32, #tpu.memory_space<vmem>>) attributes {dimension_semantics = [#tpu.dimension_semantics<parallel>, #tpu.dimension_semantics<parallel>], iteration_bounds = array<i64: 2, 1>, scalar_prefetch = 0 : i64, scratch_operands = 0 : i64, tpu.core_type = #tpu.core_type<tc>, window_params = [{transform_indices = @transform_0, window_bounds = array<i64: 256, 32>}, {pipeline_mode = #tpu.pipeline_mode<synchronous>, transform_indices = @transform_1, window_bounds = array<i64: 32, 128>}, {pipeline_mode = #tpu.pipeline_mode<synchronous>, transform_indices = @transform_2, window_bounds = array<i64: 64, 128>}, {pipeline_mode = #tpu.pipeline_mode<synchronous>, transform_indices = @transform_3, window_bounds = array<i64: 128, 64>}, {transform_indices = @transform_4, window_bounds = array<i64: 256, 64>}]} {
    %c0 = arith.constant 0 : index
    %c0_0 = arith.constant 0 : index
    %0 = vector.load %arg2[%c0, %c0_0] : memref<256x32xf32, #tpu.memory_space<vmem>>, vector<256x32xf32>
    %c0_1 = arith.constant 0 : index
    %c0_2 = arith.constant 0 : index
    %1 = vector.load %arg3[%c0_1, %c0_2] : memref<32x128xf32, #tpu.memory_space<vmem>>, vector<32x128xf32>
    %cst = arith.constant dense<0.000000e+00> : vector<256x128xf32>
    %2 = tpu.matmul %0, %1, %cst {dimension_numbers = #tpu.dot_dimension_numbers<[1], [0], [0], [1], [0, 0, 1, 1], [], []>} : vector<256x32xf32>, vector<32x128xf32>, vector<256x128xf32> -> vector<256x128xf32>
    %c0_3 = arith.constant 0 : index
    %c0_4 = arith.constant 0 : index
    %3 = vector.load %arg4[%c0_3, %c0_4] : memref<64x128xf32, #tpu.memory_space<vmem>>, vector<64x128xf32>
    %4 = tpu.concatenate %3, %3, %3, %3 in 0 : vector<64x128xf32>, vector<64x128xf32>, vector<64x128xf32>, vector<64x128xf32> -> vector<256x128xf32>
    %5 = arith.mulf %2, %4 : vector<256x128xf32>
    %c0_5 = arith.constant 0 : index
    %c0_6 = arith.constant 0 : index
    %6 = vector.load %arg5[%c0_5, %c0_6] : memref<128x64xf32, #tpu.memory_space<vmem>>, vector<128x64xf32>
    %cst_7 = arith.constant dense<0.000000e+00> : vector<256x64xf32>
    %7 = tpu.matmul %5, %6, %cst_7 {dimension_numbers = #tpu.dot_dimension_numbers<[1], [0], [0], [1], [0, 0, 1, 1], [], []>} : vector<256x128xf32>, vector<128x64xf32>, vector<256x64xf32> -> vector<256x64xf32>
    %c0_8 = arith.constant 0 : index
    %c0_9 = arith.constant 0 : index
    %8 = vector.load %arg6[%c0_8, %c0_9] : memref<256x64xf32, #tpu.memory_space<vmem>>, vector<256x64xf32>
    tpu.vector_store %arg6[%c0_8, %c0_9], %7 {strides = array<i32>} : memref<256x64xf32, #tpu.memory_space<vmem>>, vector<256x64xf32>,
    return
  }
  func.func @transform_0(%arg0: i32, %arg1: i32) -> (i32, i32) {
    %c0_i32 = arith.constant 0 : i32
    %c0_i32_0 = arith.constant 0 : i32
    return %arg0, %c0_i32 : i32, i32
  }
  func.func @transform_1(%arg0: i32, %arg1: i32) -> (i32, i32) {
    %c0_i32 = arith.constant 0 : i32
    %c0_i32_0 = arith.constant 0 : i32
    %c0_i32_1 = arith.constant 0 : i32
    return %c0_i32, %c0_i32_0 : i32, i32
  }
  func.func @transform_2(%arg0: i32, %arg1: i32) -> (i32, i32) {
    %c0_i32 = arith.constant 0 : i32
    %c0_i32_0 = arith.constant 0 : i32
    %c0_i32_1 = arith.constant 0 : i32
    return %c0_i32, %c0_i32_0 : i32, i32
  }
  func.func @transform_3(%arg0: i32, %arg1: i32) -> (i32, i32) {
    %c0_i32 = arith.constant 0 : i32
    %c0_i32_0 = arith.constant 0 : i32
    return %c0_i32, %arg1 : i32, i32
  }
  func.func @transform_4(%arg0: i32, %arg1: i32) -> (i32, i32) {
    %c0_i32 = arith.constant 0 : i32
    return %arg0, %arg1 : i32, i32
  }
}

module attributes {stable_mosaic.version = 11 : i64} {
  func.func @_relpos_kernel(%arg0: i32, %arg1: i32, %arg2: memref<256x32xf32, #tpu.memory_space<vmem>>, %arg3: memref<32x128xf32, #tpu.memory_space<vmem>>, %arg4: memref<64x128xf32, #tpu.memory_space<vmem>>, %arg5: memref<128x64xf32, #tpu.memory_space<vmem>>, %arg6: memref<256x64xf32, #tpu.memory_space<vmem>>) attributes {dimension_semantics = [#tpu.dimension_semantics<parallel>, #tpu.dimension_semantics<parallel>], iteration_bounds = array<i64: 2, 1>, scalar_prefetch = 0 : i64, scratch_operands = 0 : i64, tpu.core_type = #tpu.core_type<tc>, window_params = [{transform_indices = @transform_0, window_bounds = array<i64: 256, 32>}, {pipeline_mode = #tpu.pipeline_mode<synchronous>, transform_indices = @transform_1, window_bounds = array<i64: 32, 128>}, {pipeline_mode = #tpu.pipeline_mode<synchronous>, transform_indices = @transform_2, window_bounds = array<i64: 64, 128>}, {transform_indices = @transform_3, window_bounds = array<i64: 128, 64>}, {transform_indices = @transform_4, window_bounds = array<i64: 256, 64>}]} {
    %c0 = arith.constant 0 : index
    %c0_0 = arith.constant 0 : index
    %0 = vector.load %arg2[%c0, %c0_0] : memref<256x32xf32, #tpu.memory_space<vmem>>, vector<256x32xf32>
    %c0_1 = arith.constant 0 : index
    %c0_2 = arith.constant 0 : index
    %1 = vector.load %arg3[%c0_1, %c0_2] : memref<32x128xf32, #tpu.memory_space<vmem>>, vector<32x128xf32>
    %cst = arith.constant dense<0.000000e+00> : vector<256x128xf32>
    %2 = tpu.matmul %0, %1, %cst {dimension_numbers = #tpu.dot_dimension_numbers<[1], [0], [0], [1], [0, 0, 1, 1], [], []>} : vector<256x32xf32>, vector<32x128xf32>, vector<256x128xf32> -> vector<256x128xf32>
    %c0_3 = arith.constant 0 : index
    %c0_4 = arith.constant 0 : index
    %3 = vector.load %arg4[%c0_3, %c0_4] : memref<64x128xf32, #tpu.memory_space<vmem>>, vector<64x128xf32>
    %4 = tpu.concatenate %3, %3, %3, %3 in 0 : vector<64x128xf32>, vector<64x128xf32>, vector<64x128xf32>, vector<64x128xf32> -> vector<256x128xf32>
    %5 = arith.mulf %2, %4 : vector<256x128xf32>
    %c0_5 = arith.constant 0 : index
    %c0_6 = arith.constant 0 : index
    %6 = vector.load %arg5[%c0_5, %c0_6] : memref<128x64xf32, #tpu.memory_space<vmem>>, vector<128x64xf32>
    %cst_7 = arith.constant dense<0.000000e+00> : vector<256x64xf32>
    %7 = tpu.matmul %5, %6, %cst_7 {dimension_numbers = #tpu.dot_dimension_numbers<[1], [0], [0], [1], [0, 0, 1, 1], [], []>} : vector<256x128xf32>, vector<128x64xf32>, vector<256x64xf32> -> vector<256x64xf32>
    %c0_8 = arith.constant 0 : index
    %c0_9 = arith.constant 0 : index
    %8 = vector.load %arg6[%c0_8, %c0_9] : memref<256x64xf32, #tpu.memory_space<vmem>>, vector<256x64xf32>
    tpu.vector_store %arg6[%c0_8, %c0_9], %7 {strides = array<i32>} : memref<256x64xf32, #tpu.memory_space<vmem>>, vector<256x64xf32>,
    return
  }
  func.func @transform_0(%arg0: i32, %arg1: i32) -> (i32, i32) {
    %c0_i32 = arith.constant 0 : i32
    %c0_i32_0 = arith.constant 0 : i32
    return %arg0, %c0_i32 : i32, i32
  }
  func.func @transform_1(%arg0: i32, %arg1: i32) -> (i32, i32) {
    %c0_i32 = arith.constant 0 : i32
    %c0_i32_0 = arith.constant 0 : i32
    %c0_i32_1 = arith.constant 0 : i32
    return %c0_i32, %c0_i32_0 : i32, i32
  }
  func.func @transform_2(%arg0: i32, %arg1: i32) -> (i32, i32) {
    %c0_i32 = arith.constant 0 : i32
    %c0_i32_0 = arith.constant 0 : i32
    %c0_i32_1 = arith.constant 0 : i32
    return %c0_i32, %c0_i32_0 : i32, i32
  }
  func.func @transform_3(%arg0: i32, %arg1: i32) -> (i32, i32) {
    %c0_i32 = arith.constant 0 : i32
    %c0_i32_0 = arith.constant 0 : i32
    return %c0_i32, %arg1 : i32, i32
  }
  func.func @transform_4(%arg0: i32, %arg1: i32) -> (i32, i32) {
    %c0_i32 = arith.constant 0 : i32
    return %arg0, %arg1 : i32, i32
  }
}

</mosaic_0001>

<llo_original>
// kernel: tpu_custom_call.1
$region0: #{tpu_custom_call.1}
  #allocation0 [shape = 'u32[]', space=smem, size = 0x4, offset = 0x4, fixed_abs, tag = 'smem constant byte address 0x4 - core index']
  #allocation1 [shape = 'u32[144,128]{1,0:T(1,128)}', space=vmem, size = 0x12000, scoped, tag = 'internal scratch']
  %s0 = inlined_call_operand.vmem [shape: f32[512,32], index: 0, kind: input, shape index: {}]
  %s1 = inlined_call_operand.vmem [shape: f32[32,128], index: 1, kind: input, shape index: {}]
  %s2 = inlined_call_operand.vmem [shape: f32[64,128], index: 2, kind: input, shape index: {}]
  %s3 = inlined_call_operand.vmem [shape: f32[128,64], index: 3, kind: input, shape index: {}]
  %s4 = inlined_call_operand.vmem [shape: f32[512,64], index: 4, kind: output, shape index: {}]
  %s5 = sld [smem:[#allocation0]]
  $region49: #{tpu_custom_call.1} parent=0
    _
  %s7 = ssub.s32 1, %s5
  %s8 = scalar_select 0, %s7, %s5
  loop: start=0, step=1, limit=4
  $region2: #{tpu_custom_call.1} parent=0 // loop_pre_header
    _
  $region3: #{tpu_custom_call.1} parent=0 // loop_header
    %s10 = sphi 0, %s14
    %p11 = scmp.ge.s32.totalorder %s10, 4
    %s17 = sphi 0, %s29
    %s18 = sphi 0, %s25
    %s19 = sphi 0, %s17
    %s20 = sphi 0, %s18
    %s21 = sphi 0, %s19
    %s22 = sphi 0, %s20
    %s32 = sphi 0, %s34
    %s35 = sphi 0, %s32
    %s36 = sphi 0, %s35
    %s52 = sphi 0, %s36
    %s56 = sphi 0, %s56
    %s58 = sphi 0, %s56
    %s59 = sphi 0, %s58
    %s73 = sphi 0, %s59
    %s77 = sphi 0, %s77
    %s79 = sphi 0, %s77
    %s80 = sphi 0, %s79
    %s94 = sphi 0, %s80
    %s100 = sphi 0, %s102
    %s103 = sphi 0, %s100
    %s104 = sphi 0, %s103
    %s120 = sphi 0, %s104
    %s128 = sphi 0, %s130
    %s131 = sphi 0, %s128
    %s132 = sphi 0, %s131
    %s148 = sphi 0, %s132
  $region4: #{tpu_custom_call.1} parent=0 // loop_header_branch
    %13 = sbr.rel (%p11) target = $region8
  $region5: #{tpu_custom_call.1} parent=0 // loop_body
    %s15 = ssub.s32 %s10, 1
    %s16 = ssub.s32 %s10, 2
    %s23 = sadd.s32 1, %s18
    %p24 = scmp.ge.s32.totalorder %s23, 1
    %s25 = scalar_select %p24, 0, %s23
    %s26 = sadd.s32 1, %s17
    %s27 = scalar_select %p24, %s26, %s17
    %p28 = scmp.ge.s32.totalorder %s27, 2
    %s29 = scalar_select %p28, 0, %s27
    %s30 = ssub.s32 %s17, %s29
    %p31 = scmp.eq.s32.totalorder %s30, 0
    %s33 = sadd.s32 %s32, 1
    %s34 = scalar_select %p31, %s32, %s33
    %p37 = pneg %p31
    %p38 = scmp.eq.s32.totalorder %s10, 1
    %p39 = por %p37, %p38
    %p40 = scmp.ne.s32.totalorder %s32, %s35
    %p41 = scmp.eq.s32.totalorder %s10, 0
    %p42 = por %p40, %p41
    %p43 = scmp.ne.s32.totalorder %s32, %s35
    %p44 = scmp.eq.s32.totalorder %s15, 1
    %p45 = por %p43, %p44
    %p46 = scmp.ne.s32.totalorder %s35, %s36
    %p47 = scmp.eq.s32.totalorder %s15, 0
    %p48 = por %p46, %p47
    %p49 = scmp.ne.s32.totalorder %s35, %s36
    %p50 = scmp.eq.s32.totalorder %s16, 1
    %p51 = por %p49, %p50
    %p53 = scmp.ne.s32.totalorder %s36, %s52
    %p54 = scmp.eq.s32.totalorder %s16, 0
    %p55 = por %p53, %p54
    %s57 = sadd.s32 %s56, 1
    %p60 = scmp.eq.s32.totalorder %s10, 1
    %p61 = scmp.ne.s32.totalorder %s56, %s58
    %p62 = scmp.eq.s32.totalorder %s10, 0
    %p63 = por %p61, %p62
    %p64 = scmp.ne.s32.totalorder %s56, %s58
    %p65 = scmp.eq.s32.totalorder %s15, 1
    %p66 = por %p64, %p65
    %p67 = scmp.ne.s32.totalorder %s58, %s59
    %p68 = scmp.eq.s32.totalorder %s15, 0
    %p69 = por %p67, %p68
    %p70 = scmp.ne.s32.totalorder %s58, %s59
    %p71 = scmp.eq.s32.totalorder %s16, 1
    %p72 = por %p70, %p71
    %p74 = scmp.ne.s32.totalorder %s59, %s73
    %p75 = scmp.eq.s32.totalorder %s16, 0
    %p76 = por %p74, %p75
    %s78 = sadd.s32 %s77, 1
    %p81 = scmp.eq.s32.totalorder %s10, 1
    %p82 = scmp.ne.s32.totalorder %s77, %s79
    %p83 = scmp.eq.s32.totalorder %s10, 0
    %p84 = por %p82, %p83
    %p85 = scmp.ne.s32.totalorder %s77, %s79
    %p86 = scmp.eq.s32.totalorder %s15, 1
    %p87 = por %p85, %p86
    %p88 = scmp.ne.s32.totalorder %s79, %s80
    %p89 = scmp.eq.s32.totalorder %s15, 0
    %p90 = por %p88, %p89
    %p91 = scmp.ne.s32.totalorder %s79, %s80
    %p92 = scmp.eq.s32.totalorder %s16, 1
    %p93 = por %p91, %p92
    %p95 = scmp.ne.s32.totalorder %s80, %s94
    %p96 = scmp.eq.s32.totalorder %s16, 0
    %p97 = por %p95, %p96
    %s98 = ssub.s32 %s18, %s25
    %p99 = scmp.eq.s32.totalorder %s98, 0
    %s101 = sadd.s32 %s100, 1
    %s102 = scalar_select %p99, %s100, %s101
    %p105 = pneg %p99
    %p106 = scmp.eq.s32.totalorder %s10, 1
    %p107 = por %p105, %p106
    %p108 = scmp.ne.s32.totalorder %s100, %s103
    %p109 = scmp.eq.s32.totalorder %s10, 0
    %p110 = por %p108, %p109
    %p111 = scmp.ne.s32.totalorder %s100, %s103
    %p112 = scmp.eq.s32.totalorder %s15, 1
    %p113 = por %p111, %p112
    %p114 = scmp.ne.s32.totalorder %s103, %s104
    %p115 = scmp.eq.s32.totalorder %s15, 0
    %p116 = por %p114, %p115
    %p117 = scmp.ne.s32.totalorder %s103, %s104
    %p118 = scmp.eq.s32.totalorder %s16, 1
    %p119 = por %p117, %p118
    %p121 = scmp.ne.s32.totalorder %s104, %s120
    %p122 = scmp.eq.s32.totalorder %s16, 0
    %p123 = por %p121, %p122
    %s124 = ssub.s32 %s17, %s29
    %s125 = ssub.s32 %s18, %s25
    %s126 = sor.u32 %s124, %s125
    %p127 = scmp.eq.s32.totalorder %s126, 0
    %s129 = sadd.s32 %s128, 1
    %s130 = scalar_select %p127, %s128, %s129
    %p133 = pneg %p127
    %p134 = scmp.eq.s32.totalorder %s10, 1
    %p135 = por %p133, %p134
    %p136 = scmp.ne.s32.totalorder %s128, %s131
    %p137 = scmp.eq.s32.totalorder %s10, 0
    %p138 = por %p136, %p137
    %p139 = scmp.ne.s32.totalorder %s128, %s131
    %p140 = scmp.eq.s32.totalorder %s15, 1
    %p141 = por %p139, %p140
    %p142 = scmp.ne.s32.totalorder %s131, %s132
    %p143 = scmp.eq.s32.totalorder %s15, 0
    %p144 = por %p142, %p143
    %p145 = scmp.ne.s32.totalorder %s131, %s132
    %p146 = scmp.eq.s32.totalorder %s16, 1
    %p147 = por %p145, %p146
    %p149 = scmp.ne.s32.totalorder %s132, %s148
    %p150 = scmp.eq.s32.totalorder %s16, 0
    %p151 = por %p149, %p150
    %p152 = scmp.le.s32.totalorder 1, %s10
    %p153 = scmp.lt.s32.totalorder %s10, 3
    %p154 = pnand %p152, %p153
    %p155 = pneg %p154
    // Predicated region
    $region9: #{tpu_custom_call.1} parent=5 // pred_check
      _
    $region10: #{tpu_custom_call.1} parent=5 // pred_check_branch
      %157 = sbr.rel (%p154) target = $region12
    $region11: #{tpu_custom_call.1} parent=5 // pred_region
      %s158 = ssub.s32 %s10, 1
      // Predicated region
      $region13: #{tpu_custom_call.1} parent=11 // pred_check
        %p159 = pneg %p69
      $region14: #{tpu_custom_call.1} parent=11 // pred_check_branch
        %161 = sbr.rel (%p159) target = $region16
      $region15: #{tpu_custom_call.1} parent=11 // pred_region
        _
      $region16: #{tpu_custom_call.1} parent=11 // pred_fallthru
        _
      // Predicated region
      $region17: #{tpu_custom_call.1} parent=11 // pred_check
        %p162 = pneg %p90
      $region18: #{tpu_custom_call.1} parent=11 // pred_check_branch
        %164 = sbr.rel (%p162) target = $region20
      $region19: #{tpu_custom_call.1} parent=11 // pred_region
        _
      $region20: #{tpu_custom_call.1} parent=11 // pred_fallthru
        _
      // Predicated region
      $region21: #{tpu_custom_call.1} parent=11 // pred_check
        %p165 = pneg %p116
      $region22: #{tpu_custom_call.1} parent=11 // pred_check_branch
        %167 = sbr.rel (%p165) target = $region24
      $region23: #{tpu_custom_call.1} parent=11 // pred_region
        %p168 = scmp.lt.s32.totalorder %s20, 0
        %s169 = scalar_select %p168, %s20, 0
        %s170 = smul.addr %s169, 8
        %s171 = scalar_lea.vmem %s3, %s170
      $region24: #{tpu_custom_call.1} parent=11 // pred_fallthru
        _
    $region12: #{tpu_custom_call.1} parent=5 // pred_fallthru
      _
    %p172 = scmp.lt.s32.totalorder %s10, 2
    // Predicated region
    $region25: #{tpu_custom_call.1} parent=5 // pred_check
      %p173 = pneg %p172
    $region26: #{tpu_custom_call.1} parent=5 // pred_check_branch
      %175 = sbr.rel (%p173) target = $region28
    $region27: #{tpu_custom_call.1} parent=5 // pred_region
      // Predicated region
      $region29: #{tpu_custom_call.1} parent=27 // pred_check
        %p176 = pneg %p42
      $region30: #{tpu_custom_call.1} parent=27 // pred_check_branch
        %178 = sbr.rel (%p176) target = $region32
      $region31: #{tpu_custom_call.1} parent=27 // pred_region
        %s179 = smul.u32 32, %s17
        %p180 = scmp.lt.s32.totalorder %s179, 63
        %s181 = scalar_select %p180, %s179, 63
        %s182 = smul.addr %s181, 8
        %s183 = scalar_lea.vmem %s0, %s182
        %s184 = smul.u32 32, %s17
      $region32: #{tpu_custom_call.1} parent=27 // pred_fallthru
        _
    $region28: #{tpu_custom_call.1} parent=5 // pred_fallthru
      _
    %p185 = scmp.le.s32.totalorder 1, %s10
    %p186 = scmp.lt.s32.totalorder %s10, 3
    %p187 = pnand %p185, %p186
    %p188 = pneg %p187
    // Predicated region
    $region33: #{tpu_custom_call.1} parent=5 // pred_check
      _
    $region34: #{tpu_custom_call.1} parent=5 // pred_check_branch
      %190 = sbr.rel (%p187) target = $region36
    $region35: #{tpu_custom_call.1} parent=5 // pred_region
      %s191 = ssub.s32 %s10, 1
      %s192 = smul.u32 32, %s19
      %p193 = scmp.lt.s32.totalorder %s192, 63
      %s194 = scalar_select %p193, %s192, 63
      %s195 = smul.addr %s194, 8
      %s196 = scalar_lea.vmem %s0, %s195
      %p197 = pneg %p48
      %p198 = pneg %p45
      %p199 = pneg %p69
      %p200 = pneg %p66
      %p201 = pneg %p90
      %p202 = pneg %p87
      %p203 = scmp.lt.s32.totalorder %s20, 0
      %s204 = scalar_select %p203, %s20, 0
      %s205 = smul.addr %s204, 8
      %s206 = scalar_lea.vmem %s3, %s205
      %p207 = pneg %p116
      %p208 = pneg %p113
      %p209 = pneg %p144
      %p210 = pneg %p141
      %s211 = smul.u32 32, %s19
      %p212 = scmp.lt.s32.totalorder %s211, 63
      %s213 = scalar_select %p212, %s211, 63
      %p214 = scmp.lt.s32.totalorder %s20, 0
      %s215 = scalar_select %p214, %s20, 0
      %s216 = sadd.s32 %s215, %s213
      %s217 = smul.addr %s216, 8
      %s218 = scalar_lea.vmem %s4, %s217
      %s219 = smul.u32 32, %s19
      %p220 = scmp.lt.s32.totalorder %s219, 63
      %s221 = scalar_select %p220, %s219, 63
      %s222 = smul.addr %s221, 8
      %s223 = scalar_lea.vmem %s0, %s222
      %s224 = smul.u32 32, %s19
      %p225 = scmp.lt.s32.totalorder %s20, 0
      %s226 = scalar_select %p225, %s20, 0
      %s227 = smul.addr %s226, 8
      %s228 = scalar_lea.vmem %s3, %s227
      %s229 = smul.u32 32, %s19
      %p230 = scmp.lt.s32.totalorder %s229, 63
      %s231 = scalar_select %p230, %s229, 63
      %p232 = scmp.lt.s32.totalorder %s20, 0
      %s233 = scalar_select %p232, %s20, 0
      %s234 = sadd.s32 %s233, %s231
      %s235 = smul.addr %s234, 8
      %s236 = scalar_lea.vmem %s4, %s235
      %s237 = smul.u32 32, %s19
      %v238 = vld [vmem:[%s223] sm:$0xff]
      %v239 = vld [vmem:[%s223 + $0x8] sm:$0xff]
      %v240 = vld [vmem:[%s223 + $0x10] sm:$0xff]
      %v241 = vld [vmem:[%s223 + $0x18] sm:$0xff]
      %v242 = vld [vmem:[%s223 + $0x20] sm:$0xff]
      %v243 = vld [vmem:[%s223 + $0x28] sm:$0xff]
      %v244 = vld [vmem:[%s223 + $0x30] sm:$0xff]
      %v245 = vld [vmem:[%s223 + $0x38] sm:$0xff]
      %v246 = vld [vmem:[%s223 + $0x40] sm:$0xff]
      %v247 = vld [vmem:[%s223 + $0x48] sm:$0xff]
      %v248 = vld [vmem:[%s223 + $0x50] sm:$0xff]
      %v249 = vld [vmem:[%s223 + $0x58] sm:$0xff]
      %v250 = vld [vmem:[%s223 + $0x60] sm:$0xff]
      %v251 = vld [vmem:[%s223 + $0x68] sm:$0xff]
      %v252 = vld [vmem:[%s223 + $0x70] sm:$0xff]
      %v253 = vld [vmem:[%s223 + $0x78] sm:$0xff]
      %v254 = vld [vmem:[%s223 + $0x80] sm:$0xff]
      %v255 = vld [vmem:[%s223 + $0x88] sm:$0xff]
      %v256 = vld [vmem:[%s223 + $0x90] sm:$0xff]
      %v257 = vld [vmem:[%s223 + $0x98] sm:$0xff]
      %v258 = vld [vmem:[%s223 + $0xa0] sm:$0xff]
      %v259 = vld [vmem:[%s223 + $0xa8] sm:$0xff]
      %v260 = vld [vmem:[%s223 + $0xb0] sm:$0xff]
      %v261 = vld [vmem:[%s223 + $0xb8] sm:$0xff]
      %v262 = vld [vmem:[%s223 + $0xc0] sm:$0xff]
      %v263 = vld [vmem:[%s223 + $0xc8] sm:$0xff]
      %v264 = vld [vmem:[%s223 + $0xd0] sm:$0xff]
      %v265 = vld [vmem:[%s223 + $0xd8] sm:$0xff]
      %v266 = vld [vmem:[%s223 + $0xe0] sm:$0xff]
      %v267 = vld [vmem:[%s223 + $0xe8] sm:$0xff]
      %v268 = vld [vmem:[%s223 + $0xf0] sm:$0xff]
      %v269 = vld [vmem:[%s223 + $0xf8] sm:$0xff]
      %v270 = vld [vmem:[%s1] sm:$0xff]
      %v271 = vld [vmem:[%s1 + $0x8] sm:$0xff]
      %v272 = vld [vmem:[%s1 + $0x10] sm:$0xff]
      %v273 = vld [vmem:[%s1 + $0x18] sm:$0xff]
      %vm274 = vcmask 261120
      %v276 = vsel %vm274, %v238, 0
      %v279 = vsel %vm274, %v239, 0
      %v282 = vsel %vm274, %v240, 0
      %v285 = vsel %vm274, %v241, 0
      %v288 = vsel %vm274, %v242, 0
      %v291 = vsel %vm274, %v243, 0
      %v294 = vsel %vm274, %v244, 0
      %v297 = vsel %vm274, %v245, 0
      %v300 = vsel %vm274, %v246, 0
      %v303 = vsel %vm274, %v247, 0
      %v306 = vsel %vm274, %v248, 0
      %v309 = vsel %vm274, %v249, 0
      %v312 = vsel %vm274, %v250, 0
      %v315 = vsel %vm274, %v251, 0
      %v318 = vsel %vm274, %v252, 0
      %v321 = vsel %vm274, %v253, 0
      %v324 = vsel %vm274, %v254, 0
      %v327 = vsel %vm274, %v255, 0
      %v330 = vsel %vm274, %v256, 0
      %v333 = vsel %vm274, %v257, 0
      %v336 = vsel %vm274, %v258, 0
      %v339 = vsel %vm274, %v259, 0
      %v342 = vsel %vm274, %v260, 0
      %v345 = vsel %vm274, %v261, 0
      %v348 = vsel %vm274, %v262, 0
      %v351 = vsel %vm274, %v263, 0
      %v354 = vsel %vm274, %v264, 0
      %v357 = vsel %vm274, %v265, 0
      %v360 = vsel %vm274, %v266, 0
      %v363 = vsel %vm274, %v267, 0
      %v366 = vsel %vm274, %v268, 0
      %v369 = vsel %vm274, %v269, 0
      %371 = vmatprep.subr.mxu0 0.0
      %372 = vmatpush1.msra.mxu0 %v270
      %373 = vmatprep.subr.mxu0 0.0
      %374 = vmatpush1.msra.mxu0 %v271
      %375 = vmatprep.subr.mxu0 0.0
      %376 = vmatpush1.msra.mxu0 %v272
      %377 = vmatprep.subr.mxu0 0.0
      %378 = vmatpush1.msra.mxu0 %v273
      %379 = vmatprep.subr.mxu0 0.0
      %380 = vmatpush1.msra.mxu0 0.0
      %381 = vmatprep.subr.mxu0 0.0
      %382 = vmatpush1.msra.mxu0 0.0
      %383 = vmatprep.subr.mxu0 0.0
      %384 = vmatpush1.msra.mxu0 0.0
      %385 = vmatprep.subr.mxu0 0.0
      %386 = vmatpush1.msra.mxu0 0.0
      %387 = vmatprep.subr.mxu0 0.0
      %388 = vmatpush1.msra.mxu0 0.0
      %389 = vmatprep.subr.mxu0 0.0
      %390 = vmatpush1.msra.mxu0 0.0
      %391 = vmatprep.subr.mxu0 0.0
      %392 = vmatpush1.msra.mxu0 0.0
      %393 = vmatprep.subr.mxu0 0.0
      %394 = vmatpush1.msra.mxu0 0.0
      %395 = vmatprep.subr.mxu0 0.0
      %396 = vmatpush1.msra.mxu0 0.0
      %397 = vmatprep.subr.mxu0 0.0
      %398 = vmatpush1.msra.mxu0 0.0
      %399 = vmatprep.subr.mxu0 0.0
      %400 = vmatpush1.msra.mxu0 0.0
      %401 = vmatprep.subr.mxu0 0.0
      %402 = vmatpush1.msra.mxu0 0.0
      %403 = vmatprep.subr.mxu0 0.0
      %404 = vmatpush1.msra.mxu0 0.0
      %405 = vmatprep.subr.mxu0 0.0
      %406 = vmatpush1.msra.mxu0 0.0
      %407 = vmatprep.subr.mxu0 0.0
      %408 = vmatpush1.msra.mxu0 0.0
      %409 = vmatprep.subr.mxu0 0.0
      %410 = vmatpush1.msra.mxu0 0.0
      %411 = vmatprep.subr.mxu0 0.0
      %412 = vmatpush1.msra.mxu0 0.0
      %413 = vmatprep.subr.mxu0 0.0
      %414 = vmatpush1.msra.mxu0 0.0
      %415 = vmatprep.subr.mxu0 0.0
      %416 = vmatpush1.msra.mxu0 0.0
      %417 = vmatprep.subr.mxu0 0.0
      %418 = vmatpush1.msra.mxu0 0.0
      %419 = vmatprep.subr.mxu0 0.0
      %420 = vmatpush1.msra.mxu0 0.0
      %421 = vmatprep.subr.mxu0 0.0
      %422 = vmatpush1.msra.mxu0 0.0
      %423 = vmatprep.subr.mxu0 0.0
      %424 = vmatpush1.msra.mxu0 0.0
      %425 = vmatprep.subr.mxu0 0.0
      %426 = vmatpush1.msra.mxu0 0.0
      %427 = vmatprep.subr.mxu0 0.0
      %428 = vmatpush1.msra.mxu0 0.0
      %429 = vmatprep.subr.mxu0 0.0
      %430 = vmatpush1.msra.mxu0 0.0
      %431 = vmatprep.subr.mxu0 0.0
      %432 = vmatpush1.msra.mxu0 0.0
      %433 = vmatprep.subr.mxu0 0.0
      %434 = vmatpush1.msra.mxu0 0.0
      %435 = vmatprep.mubr.f32.mxu0 0.0
      %436 = vmatmul.mubr.f32.gmra.mrb[0].mxu0 %v276
      %v437 = vpop.f32.mrb[0].mxu0
      %v438 = vadd.f32 0.0, %v437
      %v439 = vpop.f32.mrb[0].mxu0
      %440 = vmatprep.mubr.f32.mxu0 0.0
      %441 = vmatmul.mubr.f32.gmra.mrb[0].mxu0 %v279
      %v442 = vpop.f32.mrb[0].mxu0
      %v443 = vadd.f32 0.0, %v442
      %v444 = vpop.f32.mrb[0].mxu0
      %445 = vmatprep.mubr.f32.mxu0 0.0
      %446 = vmatmul.mubr.f32.gmra.mrb[0].mxu0 %v282
      %v447 = vpop.f32.mrb[0].mxu0
      %v448 = vadd.f32 0.0, %v447
      %v449 = vpop.f32.mrb[0].mxu0
      %450 = vmatprep.mubr.f32.mxu0 0.0
      %451 = vmatmul.mubr.f32.gmra.mrb[0].mxu0 %v285
      %v452 = vpop.f32.mrb[0].mxu0
      %v453 = vadd.f32 0.0, %v452
      %v454 = vpop.f32.mrb[0].mxu0
      %455 = vmatprep.mubr.f32.mxu0 0.0
      %456 = vmatmul.mubr.f32.gmra.mrb[0].mxu0 %v288
      %v457 = vpop.f32.mrb[0].mxu0
      %v458 = vadd.f32 0.0, %v457
      %v459 = vpop.f32.mrb[0].mxu0
      %460 = vmatprep.mubr.f32.mxu0 0.0
      %461 = vmatmul.mubr.f32.gmra.mrb[0].mxu0 %v291
      %v462 = vpop.f32.mrb[0].mxu0
      %v463 = vadd.f32 0.0, %v462
      %v464 = vpop.f32.mrb[0].mxu0
      %465 = vmatprep.mubr.f32.mxu0 0.0
      %466 = vmatmul.mubr.f32.gmra.mrb[0].mxu0 %v294
      %v467 = vpop.f32.mrb[0].mxu0
      %v468 = vadd.f32 0.0, %v467
      %v469 = vpop.f32.mrb[0].mxu0
      %470 = vmatprep.mubr.f32.mxu0 0.0
      %471 = vmatmul.mubr.f32.gmra.mrb[0].mxu0 %v297
      %v472 = vpop.f32.mrb[0].mxu0
      %v473 = vadd.f32 0.0, %v472
      %v474 = vpop.f32.mrb[0].mxu0
      %475 = vmatprep.mubr.f32.mxu0 0.0
      %476 = vmatmul.mubr.f32.gmra.mrb[0].mxu0 %v300
      %v477 = vpop.f32.mrb[0].mxu0
      %v478 = vadd.f32 0.0, %v477
      %v479 = vpop.f32.mrb[0].mxu0
      %480 = vmatprep.mubr.f32.mxu0 0.0
      %481 = vmatmul.mubr.f32.gmra.mrb[0].mxu0 %v303
      %v482 = vpop.f32.mrb[0].mxu0
      %v483 = vadd.f32 0.0, %v482
      %v484 = vpop.f32.mrb[0].mxu0
      %485 = vmatprep.mubr.f32.mxu0 0.0
      %486 = vmatmul.mubr.f32.gmra.mrb[0].mxu0 %v306
      %v487 = vpop.f32.mrb[0].mxu0
      %v488 = vadd.f32 0.0, %v487
      %v489 = vpop.f32.mrb[0].mxu0
      %490 = vmatprep.mubr.f32.mxu0 0.0
      %491 = vmatmul.mubr.f32.gmra.mrb[0].mxu0 %v309
      %v492 = vpop.f32.mrb[0].mxu0
      %v493 = vadd.f32 0.0, %v492
      %v494 = vpop.f32.mrb[0].mxu0
      %495 = vmatprep.mubr.f32.mxu0 0.0
      %496 = vmatmul.mubr.f32.gmra.mrb[0].mxu0 %v312
      %v497 = vpop.f32.mrb[0].mxu0
      %v498 = vadd.f32 0.0, %v497
      %v499 = vpop.f32.mrb[0].mxu0
      %500 = vmatprep.mubr.f32.mxu0 0.0
      %501 = vmatmul.mubr.f32.gmra.mrb[0].mxu0 %v315
      %v502 = vpop.f32.mrb[0].mxu0
      %v503 = vadd.f32 0.0, %v502
      %v504 = vpop.f32.mrb[0].mxu0
      %505 = vmatprep.mubr.f32.mxu0 0.0
      %506 = vmatmul.mubr.f32.gmra.mrb[0].mxu0 %v318
      %v507 = vpop.f32.mrb[0].mxu0
      %v508 = vadd.f32 0.0, %v507
      %v509 = vpop.f32.mrb[0].mxu0
      %510 = vmatprep.mubr.f32.mxu0 0.0
      %511 = vmatmul.mubr.f32.gmra.mrb[0].mxu0 %v321
      %v512 = vpop.f32.mrb[0].mxu0
      %v513 = vadd.f32 0.0, %v512
      %v514 = vpop.f32.mrb[0].mxu0
      %515 = vmatprep.mubr.f32.mxu0 0.0
      %516 = vmatmul.mubr.f32.gmra.mrb[0].mxu0 %v324
      %v517 = vpop.f32.mrb[0].mxu0
      %v518 = vadd.f32 0.0, %v517
      %v519 = vpop.f32.mrb[0].mxu0
      %520 = vmatprep.mubr.f32.mxu0 0.0
      %521 = vmatmul.mubr.f32.gmra.mrb[0].mxu0 %v327
      %v522 = vpop.f32.mrb[0].mxu0
      %v523 = vadd.f32 0.0, %v522
      %v524 = vpop.f32.mrb[0].mxu0
      %525 = vmatprep.mubr.f32.mxu0 0.0
      %526 = vmatmul.mubr.f32.gmra.mrb[0].mxu0 %v330
      %v527 = vpop.f32.mrb[0].mxu0
      %v528 = vadd.f32 0.0, %v527
      %v529 = vpop.f32.mrb[0].mxu0
      %530 = vmatprep.mubr.f32.mxu0 0.0
      %531 = vmatmul.mubr.f32.gmra.mrb[0].mxu0 %v333
      %v532 = vpop.f32.mrb[0].mxu0
      %v533 = vadd.f32 0.0, %v532
      %v534 = vpop.f32.mrb[0].mxu0
      %535 = vmatprep.mubr.f32.mxu0 0.0
      %536 = vmatmul.mubr.f32.gmra.mrb[0].mxu0 %v336
      %v537 = vpop.f32.mrb[0].mxu0
      %v538 = vadd.f32 0.0, %v537
      %v539 = vpop.f32.mrb[0].mxu0
      %540 = vmatprep.mubr.f32.mxu0 0.0
      %541 = vmatmul.mubr.f32.gmra.mrb[0].mxu0 %v339
      %v542 = vpop.f32.mrb[0].mxu0
      %v543 = vadd.f32 0.0, %v542
      %v544 = vpop.f32.mrb[0].mxu0
      %545 = vmatprep.mubr.f32.mxu0 0.0
      %546 = vmatmul.mubr.f32.gmra.mrb[0].mxu0 %v342
      %v547 = vpop.f32.mrb[0].mxu0
      %v548 = vadd.f32 0.0, %v547
      %v549 = vpop.f32.mrb[0].mxu0
      %550 = vmatprep.mubr.f32.mxu0 0.0
      %551 = vmatmul.mubr.f32.gmra.mrb[0].mxu0 %v345
      %v552 = vpop.f32.mrb[0].mxu0
      %v553 = vadd.f32 0.0, %v552
      %v554 = vpop.f32.mrb[0].mxu0
      %555 = vmatprep.mubr.f32.mxu0 0.0
      %556 = vmatmul.mubr.f32.gmra.mrb[0].mxu0 %v348
      %v557 = vpop.f32.mrb[0].mxu0
      %v558 = vadd.f32 0.0, %v557
      %v559 = vpop.f32.mrb[0].mxu0
      %560 = vmatprep.mubr.f32.mxu0 0.0
      %561 = vmatmul.mubr.f32.gmra.mrb[0].mxu0 %v351
      %v562 = vpop.f32.mrb[0].mxu0
      %v563 = vadd.f32 0.0, %v562
      %v564 = vpop.f32.mrb[0].mxu0
      %565 = vmatprep.mubr.f32.mxu0 0.0
      %566 = vmatmul.mubr.f32.gmra.mrb[0].mxu0 %v354
      %v567 = vpop.f32.mrb[0].mxu0
      %v568 = vadd.f32 0.0, %v567
      %v569 = vpop.f32.mrb[0].mxu0
      %570 = vmatprep.mubr.f32.mxu0 0.0
      %571 = vmatmul.mubr.f32.gmra.mrb[0].mxu0 %v357
      %v572 = vpop.f32.mrb[0].mxu0
      %v573 = vadd.f32 0.0, %v572
      %v574 = vpop.f32.mrb[0].mxu0
      %575 = vmatprep.mubr.f32.mxu0 0.0
      %576 = vmatmul.mubr.f32.gmra.mrb[0].mxu0 %v360
      %v577 = vpop.f32.mrb[0].mxu0
      %v578 = vadd.f32 0.0, %v577
      %v579 = vpop.f32.mrb[0].mxu0
      %580 = vmatprep.mubr.f32.mxu0 0.0
      %581 = vmatmul.mubr.f32.gmra.mrb[0].mxu0 %v363
      %v582 = vpop.f32.mrb[0].mxu0
      %v583 = vadd.f32 0.0, %v582
      %v584 = vpop.f32.mrb[0].mxu0
      %585 = vmatprep.mubr.f32.mxu0 0.0
      %586 = vmatmul.mubr.f32.gmra.mrb[0].mxu0 %v366
      %v587 = vpop.f32.mrb[0].mxu0
      %v588 = vadd.f32 0.0, %v587
      %v589 = vpop.f32.mrb[0].mxu0
      %590 = vmatprep.mubr.f32.mxu0 0.0
      %591 = vmatmul.mubr.f32.gmra.mrb[0].mxu0 %v369
      %v592 = vpop.f32.mrb[0].mxu0
      %v593 = vadd.f32 0.0, %v592
      %v594 = vpop.f32.mrb[0].mxu0
      %595 = vdwg.mxu0
      %v596 = vld [vmem:[%s2] sm:$0xff]
      %v597 = vld [vmem:[%s2 + $0x8] sm:$0xff]
      %v598 = vld [vmem:[%s2 + $0x10] sm:$0xff]
      %v599 = vld [vmem:[%s2 + $0x18] sm:$0xff]
      %v600 = vld [vmem:[%s2 + $0x20] sm:$0xff]
      %v601 = vld [vmem:[%s2 + $0x28] sm:$0xff]
      %v602 = vld [vmem:[%s2 + $0x30] sm:$0xff]
      %v603 = vld [vmem:[%s2 + $0x38] sm:$0xff]
      %v604 = vmul.f32 %v438, %v596
      %v605 = vmul.f32 %v443, %v597
      %v606 = vmul.f32 %v448, %v598
      %v607 = vmul.f32 %v453, %v599
      %v608 = vmul.f32 %v458, %v600
      %v609 = vmul.f32 %v463, %v601
      %v610 = vmul.f32 %v468, %v602
      %v611 = vmul.f32 %v473, %v603
      %v612 = vmul.f32 %v478, %v596
      %v613 = vmul.f32 %v483, %v597
      %v614 = vmul.f32 %v488, %v598
      %v615 = vmul.f32 %v493, %v599
      %v616 = vmul.f32 %v498, %v600
      %v617 = vmul.f32 %v503, %v601
      %v618 = vmul.f32 %v508, %v602
      %v619 = vmul.f32 %v513, %v603
      %v620 = vmul.f32 %v518, %v596
      %v621 = vmul.f32 %v523, %v597
      %v622 = vmul.f32 %v528, %v598
      %v623 = vmul.f32 %v533, %v599
      %v624 = vmul.f32 %v538, %v600
      %v625 = vmul.f32 %v543, %v601
      %v626 = vmul.f32 %v548, %v602
      %v627 = vmul.f32 %v553, %v603
      %v628 = vmul.f32 %v558, %v596
      %v629 = vmul.f32 %v563, %v597
      %v630 = vmul.f32 %v568, %v598
      %v631 = vmul.f32 %v573, %v599
      %v632 = vmul.f32 %v578, %v600
      %v633 = vmul.f32 %v583, %v601
      %v634 = vmul.f32 %v588, %v602
      %v635 = vmul.f32 %v593, %v603
      %v636 = vld [vmem:[%s228] sm:$0xff]
      %v637 = vld [vmem:[%s228 + $0x8] sm:$0xff]
      %v638 = vld [vmem:[%s228 + $0x10] sm:$0xff]
      %v639 = vld [vmem:[%s228 + $0x18] sm:$0xff]
      %v640 = vld [vmem:[%s228 + $0x20] sm:$0xff]
      %v641 = vld [vmem:[%s228 + $0x28] sm:$0xff]
      %v642 = vld [vmem:[%s228 + $0x30] sm:$0xff]
      %v643 = vld [vmem:[%s228 + $0x38] sm:$0xff]
      %v644 = vld [vmem:[%s228 + $0x40] sm:$0xff]
      %v645 = vld [vmem:[%s228 + $0x48] sm:$0xff]
      %v646 = vld [vmem:[%s228 + $0x50] sm:$0xff]
      %v647 = vld [vmem:[%s228 + $0x58] sm:$0xff]
      %v648 = vld [vmem:[%s228 + $0x60] sm:$0xff]
      %v649 = vld [vmem:[%s228 + $0x68] sm:$0xff]
      %v650 = vld [vmem:[%s228 + $0x70] sm:$0xff]
      %v651 = vld [vmem:[%s228 + $0x78] sm:$0xff]
      %652 = vmatprep.subr.mxu0 0.0
      %653 = vmatpush1.msra.mxu0 %v636
      %654 = vmatprep.subr.mxu0 0.0
      %655 = vmatpush1.msra.mxu0 %v637
      %656 = vmatprep.subr.mxu0 0.0
      %657 = vmatpush1.msra.mxu0 %v638
      %658 = vmatprep.subr.mxu0 0.0
      %659 = vmatpush1.msra.mxu0 %v639
      %660 = vmatprep.subr.mxu0 0.0
      %661 = vmatpush1.msra.mxu0 %v640
      %662 = vmatprep.subr.mxu0 0.0
      %663 = vmatpush1.msra.mxu0 %v641
      %664 = vmatprep.subr.mxu0 0.0
      %665 = vmatpush1.msra.mxu0 %v642
      %666 = vmatprep.subr.mxu0 0.0
      %667 = vmatpush1.msra.mxu0 %v643
      %668 = vmatprep.subr.mxu0 0.0
      %669 = vmatpush1.msra.mxu0 %v644
      %670 = vmatprep.subr.mxu0 0.0
      %671 = vmatpush1.msra.mxu0 %v645
      %672 = vmatprep.subr.mxu0 0.0
      %673 = vmatpush1.msra.mxu0 %v646
      %674 = vmatprep.subr.mxu0 0.0
      %675 = vmatpush1.msra.mxu0 %v647
      %676 = vmatprep.subr.mxu0 0.0
      %677 = vmatpush1.msra.mxu0 %v648
      %678 = vmatprep.subr.mxu0 0.0
      %679 = vmatpush1.msra.mxu0 %v649
      %680 = vmatprep.subr.mxu0 0.0
      %681 = vmatpush1.msra.mxu0 %v650
      %682 = vmatprep.subr.mxu0 0.0
      %683 = vmatpush1.msra.mxu0 %v651
      %684 = vmatprep.subr.mxu0 0.0
      %685 = vmatpush1.msra.mxu0 0.0
      %686 = vmatprep.subr.mxu0 0.0
      %687 = vmatpush1.msra.mxu0 0.0
      %688 = vmatprep.subr.mxu0 0.0
      %689 = vmatpush1.msra.mxu0 0.0
      %690 = vmatprep.subr.mxu0 0.0
      %691 = vmatpush1.msra.mxu0 0.0
      %692 = vmatprep.subr.mxu0 0.0
      %693 = vmatpush1.msra.mxu0 0.0
      %694 = vmatprep.subr.mxu0 0.0
      %695 = vmatpush1.msra.mxu0 0.0
      %696 = vmatprep.subr.mxu0 0.0
      %697 = vmatpush1.msra.mxu0 0.0
      %698 = vmatprep.subr.mxu0 0.0
      %699 = vmatpush1.msra.mxu0 0.0
      %700 = vmatprep.subr.mxu0 0.0
      %701 = vmatpush1.msra.mxu0 0.0
      %702 = vmatprep.subr.mxu0 0.0
      %703 = vmatpush1.msra.mxu0 0.0
      %704 = vmatprep.subr.mxu0 0.0
      %705 = vmatpush1.msra.mxu0 0.0
      %706 = vmatprep.subr.mxu0 0.0
      %707 = vmatpush1.msra.mxu0 0.0
      %708 = vmatprep.subr.mxu0 0.0
      %709 = vmatpush1.msra.mxu0 0.0
      %710 = vmatprep.subr.mxu0 0.0
      %711 = vmatpush1.msra.mxu0 0.0
      %712 = vmatprep.subr.mxu0 0.0
      %713 = vmatpush1.msra.mxu0 0.0
      %714 = vmatprep.subr.mxu0 0.0
      %715 = vmatpush1.msra.mxu0 0.0
      %716 = vmatprep.mubr.f32.mxu0 0.0
      %717 = vmatmul.mubr.f32.gmra.mrb[0].mxu0 %v604
      %v718 = vpop.f32.mrb[0].mxu0
      %v719 = vadd.f32 0.0, %v718
      %v720 = vpop.f32.mrb[0].mxu0
      %721 = vmatprep.mubr.f32.mxu0 0.0
      %722 = vmatmul.mubr.f32.gmra.mrb[0].mxu0 %v605
      %v723 = vpop.f32.mrb[0].mxu0
      %v724 = vadd.f32 0.0, %v723
      %v725 = vpop.f32.mrb[0].mxu0
      %726 = vmatprep.mubr.f32.mxu0 0.0
      %727 = vmatmul.mubr.f32.gmra.mrb[0].mxu0 %v606
      %v728 = vpop.f32.mrb[0].mxu0
      %v729 = vadd.f32 0.0, %v728
      %v730 = vpop.f32.mrb[0].mxu0
      %731 = vmatprep.mubr.f32.mxu0 0.0
      %732 = vmatmul.mubr.f32.gmra.mrb[0].mxu0 %v607
      %v733 = vpop.f32.mrb[0].mxu0
      %v734 = vadd.f32 0.0, %v733
      %v735 = vpop.f32.mrb[0].mxu0
      %736 = vmatprep.mubr.f32.mxu0 0.0
      %737 = vmatmul.mubr.f32.gmra.mrb[0].mxu0 %v608
      %v738 = vpop.f32.mrb[0].mxu0
      %v739 = vadd.f32 0.0, %v738
      %v740 = vpop.f32.mrb[0].mxu0
      %741 = vmatprep.mubr.f32.mxu0 0.0
      %742 = vmatmul.mubr.f32.gmra.mrb[0].mxu0 %v609
      %v743 = vpop.f32.mrb[0].mxu0
      %v744 = vadd.f32 0.0, %v743
      %v745 = vpop.f32.mrb[0].mxu0
      %746 = vmatprep.mubr.f32.mxu0 0.0
      %747 = vmatmul.mubr.f32.gmra.mrb[0].mxu0 %v610
      %v748 = vpop.f32.mrb[0].mxu0
      %v749 = vadd.f32 0.0, %v748
      %v750 = vpop.f32.mrb[0].mxu0
      %751 = vmatprep.mubr.f32.mxu0 0.0
      %752 = vmatmul.mubr.f32.gmra.mrb[0].mxu0 %v611
      %v753 = vpop.f32.mrb[0].mxu0
      %v754 = vadd.f32 0.0, %v753
      %v755 = vpop.f32.mrb[0].mxu0
      %756 = vmatprep.mubr.f32.mxu0 0.0
      %757 = vmatmul.mubr.f32.gmra.mrb[0].mxu0 %v612
      %v758 = vpop.f32.mrb[0].mxu0
      %v759 = vadd.f32 0.0, %v758
      %v760 = vpop.f32.mrb[0].mxu0
      %761 = vmatprep.mubr.f32.mxu0 0.0
      %762 = vmatmul.mubr.f32.gmra.mrb[0].mxu0 %v613
      %v763 = vpop.f32.mrb[0].mxu0
      %v764 = vadd.f32 0.0, %v763
      %v765 = vpop.f32.mrb[0].mxu0
      %766 = vmatprep.mubr.f32.mxu0 0.0
      %767 = vmatmul.mubr.f32.gmra.mrb[0].mxu0 %v614
      %v768 = vpop.f32.mrb[0].mxu0
      %v769 = vadd.f32 0.0, %v768
      %v770 = vpop.f32.mrb[0].mxu0
      %771 = vmatprep.mubr.f32.mxu0 0.0
      %772 = vmatmul.mubr.f32.gmra.mrb[0].mxu0 %v615
      %v773 = vpop.f32.mrb[0].mxu0
      %v774 = vadd.f32 0.0, %v773
      %v775 = vpop.f32.mrb[0].mxu0
      %776 = vmatprep.mubr.f32.mxu0 0.0
      %777 = vmatmul.mubr.f32.gmra.mrb[0].mxu0 %v616
      %v778 = vpop.f32.mrb[0].mxu0
      %v779 = vadd.f32 0.0, %v778
      %v780 = vpop.f32.mrb[0].mxu0
      %781 = vmatprep.mubr.f32.mxu0 0.0
      %782 = vmatmul.mubr.f32.gmra.mrb[0].mxu0 %v617
      %v783 = vpop.f32.mrb[0].mxu0
      %v784 = vadd.f32 0.0, %v783
      %v785 = vpop.f32.mrb[0].mxu0
      %786 = vmatprep.mubr.f32.mxu0 0.0
      %787 = vmatmul.mubr.f32.gmra.mrb[0].mxu0 %v618
      %v788 = vpop.f32.mrb[0].mxu0
      %v789 = vadd.f32 0.0, %v788
      %v790 = vpop.f32.mrb[0].mxu0
      %791 = vmatprep.mubr.f32.mxu0 0.0
      %792 = vmatmul.mubr.f32.gmra.mrb[0].mxu0 %v619
      %v793 = vpop.f32.mrb[0].mxu0
      %v794 = vadd.f32 0.0, %v793
      %v795 = vpop.f32.mrb[0].mxu0
      %796 = vmatprep.mubr.f32.mxu0 0.0
      %797 = vmatmul.mubr.f32.gmra.mrb[0].mxu0 %v620
      %v798 = vpop.f32.mrb[0].mxu0
      %v799 = vadd.f32 0.0, %v798
      %v800 = vpop.f32.mrb[0].mxu0
      %801 = vmatprep.mubr.f32.mxu0 0.0
      %802 = vmatmul.mubr.f32.gmra.mrb[0].mxu0 %v621
      %v803 = vpop.f32.mrb[0].mxu0
      %v804 = vadd.f32 0.0, %v803
      %v805 = vpop.f32.mrb[0].mxu0
      %806 = vmatprep.mubr.f32.mxu0 0.0
      %807 = vmatmul.mubr.f32.gmra.mrb[0].mxu0 %v622
      %v808 = vpop.f32.mrb[0].mxu0
      %v809 = vadd.f32 0.0, %v808
      %v810 = vpop.f32.mrb[0].mxu0
      %811 = vmatprep.mubr.f32.mxu0 0.0
      %812 = vmatmul.mubr.f32.gmra.mrb[0].mxu0 %v623
      %v813 = vpop.f32.mrb[0].mxu0
      %v814 = vadd.f32 0.0, %v813
      %v815 = vpop.f32.mrb[0].mxu0
      %816 = vmatprep.mubr.f32.mxu0 0.0
      %817 = vmatmul.mubr.f32.gmra.mrb[0].mxu0 %v624
      %v818 = vpop.f32.mrb[0].mxu0
      %v819 = vadd.f32 0.0, %v818
      %v820 = vpop.f32.mrb[0].mxu0
      %821 = vmatprep.mubr.f32.mxu0 0.0
      %822 = vmatmul.mubr.f32.gmra.mrb[0].mxu0 %v625
      %v823 = vpop.f32.mrb[0].mxu0
      %v824 = vadd.f32 0.0, %v823
      %v825 = vpop.f32.mrb[0].mxu0
      %826 = vmatprep.mubr.f32.mxu0 0.0
      %827 = vmatmul.mubr.f32.gmra.mrb[0].mxu0 %v626
      %v828 = vpop.f32.mrb[0].mxu0
      %v829 = vadd.f32 0.0, %v828
      %v830 = vpop.f32.mrb[0].mxu0
      %831 = vmatprep.mubr.f32.mxu0 0.0
      %832 = vmatmul.mubr.f32.gmra.mrb[0].mxu0 %v627
      %v833 = vpop.f32.mrb[0].mxu0
      %v834 = vadd.f32 0.0, %v833
      %v835 = vpop.f32.mrb[0].mxu0
      %836 = vmatprep.mubr.f32.mxu0 0.0
      %837 = vmatmul.mubr.f32.gmra.mrb[0].mxu0 %v628
      %v838 = vpop.f32.mrb[0].mxu0
      %v839 = vadd.f32 0.0, %v838
      %v840 = vpop.f32.mrb[0].mxu0
      %841 = vmatprep.mubr.f32.mxu0 0.0
      %842 = vmatmul.mubr.f32.gmra.mrb[0].mxu0 %v629
      %v843 = vpop.f32.mrb[0].mxu0
      %v844 = vadd.f32 0.0, %v843
      %v845 = vpop.f32.mrb[0].mxu0
      %846 = vmatprep.mubr.f32.mxu0 0.0
      %847 = vmatmul.mubr.f32.gmra.mrb[0].mxu0 %v630
      %v848 = vpop.f32.mrb[0].mxu0
      %v849 = vadd.f32 0.0, %v848
      %v850 = vpop.f32.mrb[0].mxu0
      %851 = vmatprep.mubr.f32.mxu0 0.0
      %852 = vmatmul.mubr.f32.gmra.mrb[0].mxu0 %v631
      %v853 = vpop.f32.mrb[0].mxu0
      %v854 = vadd.f32 0.0, %v853
      %v855 = vpop.f32.mrb[0].mxu0
      %856 = vmatprep.mubr.f32.mxu0 0.0
      %857 = vmatmul.mubr.f32.gmra.mrb[0].mxu0 %v632
      %v858 = vpop.f32.mrb[0].mxu0
      %v859 = vadd.f32 0.0, %v858
      %v860 = vpop.f32.mrb[0].mxu0
      %861 = vmatprep.mubr.f32.mxu0 0.0
      %862 = vmatmul.mubr.f32.gmra.mrb[0].mxu0 %v633
      %v863 = vpop.f32.mrb[0].mxu0
      %v864 = vadd.f32 0.0, %v863
      %v865 = vpop.f32.mrb[0].mxu0
      %866 = vmatprep.mubr.f32.mxu0 0.0
      %867 = vmatmul.mubr.f32.gmra.mrb[0].mxu0 %v634
      %v868 = vpop.f32.mrb[0].mxu0
      %v869 = vadd.f32 0.0, %v868
      %v870 = vpop.f32.mrb[0].mxu0
      %871 = vmatprep.mubr.f32.mxu0 0.0
      %872 = vmatmul.mubr.f32.gmra.mrb[0].mxu0 %v635
      %v873 = vpop.f32.mrb[0].mxu0
      %v874 = vadd.f32 0.0, %v873
      %v875 = vpop.f32.mrb[0].mxu0
      %876 = vdwg.mxu0
      %vm877 = vcmask 523264
      %878 = vst.msk [vmem:[%s236] sm:$0xff] %vm877, %v719
      %879 = vst.msk [vmem:[%s236 + $0x8] sm:$0xff] %vm877, %v724
      %880 = vst.msk [vmem:[%s236 + $0x10] sm:$0xff] %vm877, %v729
      %881 = vst.msk [vmem:[%s236 + $0x18] sm:$0xff] %vm877, %v734
      %882 = vst.msk [vmem:[%s236 + $0x20] sm:$0xff] %vm877, %v739
      %883 = vst.msk [vmem:[%s236 + $0x28] sm:$0xff] %vm877, %v744
      %884 = vst.msk [vmem:[%s236 + $0x30] sm:$0xff] %vm877, %v749
      %885 = vst.msk [vmem:[%s236 + $0x38] sm:$0xff] %vm877, %v754
      %886 = vst.msk [vmem:[%s236 + $0x40] sm:$0xff] %vm877, %v759
      %887 = vst.msk [vmem:[%s236 + $0x48] sm:$0xff] %vm877, %v764
      %888 = vst.msk [vmem:[%s236 + $0x50] sm:$0xff] %vm877, %v769
      %889 = vst.msk [vmem:[%s236 + $0x58] sm:$0xff] %vm877, %v774
      %890 = vst.msk [vmem:[%s236 + $0x60] sm:$0xff] %vm877, %v779
      %891 = vst.msk [vmem:[%s236 + $0x68] sm:$0xff] %vm877, %v784
      %892 = vst.msk [vmem:[%s236 + $0x70] sm:$0xff] %vm877, %v789
      %893 = vst.msk [vmem:[%s236 + $0x78] sm:$0xff] %vm877, %v794
      %894 = vst.msk [vmem:[%s236 + $0x80] sm:$0xff] %vm877, %v799
      %895 = vst.msk [vmem:[%s236 + $0x88] sm:$0xff] %vm877, %v804
      %896 = vst.msk [vmem:[%s236 + $0x90] sm:$0xff] %vm877, %v809
      %897 = vst.msk [vmem:[%s236 + $0x98] sm:$0xff] %vm877, %v814
      %898 = vst.msk [vmem:[%s236 + $0xa0] sm:$0xff] %vm877, %v819
      %899 = vst.msk [vmem:[%s236 + $0xa8] sm:$0xff] %vm877, %v824
      %900 = vst.msk [vmem:[%s236 + $0xb0] sm:$0xff] %vm877, %v829
      %901 = vst.msk [vmem:[%s236 + $0xb8] sm:$0xff] %vm877, %v834
      %902 = vst.msk [vmem:[%s236 + $0xc0] sm:$0xff] %vm877, %v839
      %903 = vst.msk [vmem:[%s236 + $0xc8] sm:$0xff] %vm877, %v844
      %904 = vst.msk [vmem:[%s236 + $0xd0] sm:$0xff] %vm877, %v849
      %905 = vst.msk [vmem:[%s236 + $0xd8] sm:$0xff] %vm877, %v854
      %906 = vst.msk [vmem:[%s236 + $0xe0] sm:$0xff] %vm877, %v859
      %907 = vst.msk [vmem:[%s236 + $0xe8] sm:$0xff] %vm877, %v864
      %908 = vst.msk [vmem:[%s236 + $0xf0] sm:$0xff] %vm877, %v869
      %909 = vst.msk [vmem:[%s236 + $0xf8] sm:$0xff] %vm877, %v874
      %s910 = smul.u32 32, %s19
      %p911 = scmp.lt.s32.totalorder %s910, 63
      %s912 = scalar_select %p911, %s910, 63
      %p913 = scmp.lt.s32.totalorder %s20, 0
      %s914 = scalar_select %p913, %s20, 0
      %s915 = sadd.s32 %s914, %s912
      %s916 = smul.addr %s915, 8
      %s917 = scalar_lea.vmem %s4, %s916
      // Predicated region
      $region37: #{tpu_custom_call.1} parent=35 // pred_check
        %p918 = pneg %p141
      $region38: #{tpu_custom_call.1} parent=35 // pred_check_branch
        %920 = sbr.rel (%p918) target = $region40
      $region39: #{tpu_custom_call.1} parent=35 // pred_region
        %s921 = smul.u32 32, %s19
      $region40: #{tpu_custom_call.1} parent=35 // pred_fallthru
        _
    $region36: #{tpu_custom_call.1} parent=5 // pred_fallthru
      _
    %p922 = scmp.le.s32.totalorder 2, %s10
    // Predicated region
    $region41: #{tpu_custom_call.1} parent=5 // pred_check
      %p923 = pneg %p922
    $region42: #{tpu_custom_call.1} parent=5 // pred_check_branch
      %925 = sbr.rel (%p923) target = $region44
    $region43: #{tpu_custom_call.1} parent=5 // pred_region
      %s926 = ssub.s32 %s10, 2
      // Predicated region
      $region45: #{tpu_custom_call.1} parent=43 // pred_check
        %p927 = pneg %p147
      $region46: #{tpu_custom_call.1} parent=43 // pred_check_branch
        %929 = sbr.rel (%p927) target = $region48
      $region47: #{tpu_custom_call.1} parent=43 // pred_region
        %s930 = smul.u32 32, %s21
        %p931 = scmp.lt.s32.totalorder %s930, 63
        %s932 = scalar_select %p931, %s930, 63
        %p933 = scmp.lt.s32.totalorder %s22, 0
        %s934 = scalar_select %p933, %s22, 0
        %s935 = sadd.s32 %s934, %s932
        %s936 = smul.addr %s935, 8
        %s937 = scalar_lea.vmem %s4, %s936
      $region48: #{tpu_custom_call.1} parent=43 // pred_fallthru
        _
    $region44: #{tpu_custom_call.1} parent=5 // pred_fallthru
      _
  $region6: #{tpu_custom_call.1} parent=0 // loop_footer
    %s14 = sadd.s32 1, %s10
  $region7: #{tpu_custom_call.1} parent=0 // loop_footer_branch
    %9 = sbr.rel target = $region3
  $region8: #{tpu_custom_call.1} parent=0 // loop_exit
    _

// kernel: tpu_custom_call.1
$region0: #{tpu_custom_call.1}
  #allocation0 [shape = 'u32[]', space=smem, size = 0x4, offset = 0x4, fixed_abs, tag = 'smem constant byte address 0x4 - core index']
  #allocation1 [shape = 'u32[144,128]{1,0:T(1,128)}', space=vmem, size = 0x12000, scoped, tag = 'internal scratch']
  %s0 = inlined_call_operand.vmem [shape: f32[512,32], index: 0, kind: input, shape index: {}]
  %s1 = inlined_call_operand.vmem [shape: f32[32,128], index: 1, kind: input, shape index: {}]
  %s2 = inlined_call_operand.vmem [shape: f32[64,128], index: 2, kind: input, shape index: {}]
  %s3 = inlined_call_operand.vmem [shape: f32[128,64], index: 3, kind: input, shape index: {}]
  %s4 = inlined_call_operand.vmem [shape: f32[512,64], index: 4, kind: output, shape index: {}]
  %s5 = sld [smem:[#allocation0]]
  $region49: #{tpu_custom_call.1} parent=0
    _
  %s7 = ssub.s32 1, %s5
  %s8 = scalar_select 0, %s7, %s5
  loop: start=0, step=1, limit=4
  $region2: #{tpu_custom_call.1} parent=0 // loop_pre_header
    _
  $region3: #{tpu_custom_call.1} parent=0 // loop_header
    %s10 = sphi 0, %s14
    %p11 = scmp.ge.s32.totalorder %s10, 4
    %s17 = sphi 0, %s29
    %s18 = sphi 0, %s25
    %s19 = sphi 0, %s17
    %s20 = sphi 0, %s18
    %s21 = sphi 0, %s19
    %s22 = sphi 0, %s20
    %s32 = sphi 0, %s34
    %s35 = sphi 0, %s32
    %s36 = sphi 0, %s35
    %s52 = sphi 0, %s36
    %s56 = sphi 0, %s56
    %s58 = sphi 0, %s56
    %s59 = sphi 0, %s58
    %s73 = sphi 0, %s59
    %s77 = sphi 0, %s77
    %s79 = sphi 0, %s77
    %s80 = sphi 0, %s79
    %s94 = sphi 0, %s80
    %s100 = sphi 0, %s102
    %s103 = sphi 0, %s100
    %s104 = sphi 0, %s103
    %s120 = sphi 0, %s104
    %s128 = sphi 0, %s130
    %s131 = sphi 0, %s128
    %s132 = sphi 0, %s131
    %s148 = sphi 0, %s132
  $region4: #{tpu_custom_call.1} parent=0 // loop_header_branch
    %13 = sbr.rel (%p11) target = $region8
  $region5: #{tpu_custom_call.1} parent=0 // loop_body
    %s15 = ssub.s32 %s10, 1
    %s16 = ssub.s32 %s10, 2
    %s23 = sadd.s32 1, %s18
    %p24 = scmp.ge.s32.totalorder %s23, 1
    %s25 = scalar_select %p24, 0, %s23
    %s26 = sadd.s32 1, %s17
    %s27 = scalar_select %p24, %s26, %s17
    %p28 = scmp.ge.s32.totalorder %s27, 2
    %s29 = scalar_select %p28, 0, %s27
    %s30 = ssub.s32 %s17, %s29
    %p31 = scmp.eq.s32.totalorder %s30, 0
    %s33 = sadd.s32 %s32, 1
    %s34 = scalar_select %p31, %s32, %s33
    %p37 = pneg %p31
    %p38 = scmp.eq.s32.totalorder %s10, 1
    %p39 = por %p37, %p38
    %p40 = scmp.ne.s32.totalorder %s32, %s35
    %p41 = scmp.eq.s32.totalorder %s10, 0
    %p42 = por %p40, %p41
    %p43 = scmp.ne.s32.totalorder %s32, %s35
    %p44 = scmp.eq.s32.totalorder %s15, 1
    %p45 = por %p43, %p44
    %p46 = scmp.ne.s32.totalorder %s35, %s36
    %p47 = scmp.eq.s32.totalorder %s15, 0
    %p48 = por %p46, %p47
    %p49 = scmp.ne.s32.totalorder %s35, %s36
    %p50 = scmp.eq.s32.totalorder %s16, 1
    %p51 = por %p49, %p50
    %p53 = scmp.ne.s32.totalorder %s36, %s52
    %p54 = scmp.eq.s32.totalorder %s16, 0
    %p55 = por %p53, %p54
    %s57 = sadd.s32 %s56, 1
    %p60 = scmp.eq.s32.totalorder %s10, 1
    %p61 = scmp.ne.s32.totalorder %s56, %s58
    %p62 = scmp.eq.s32.totalorder %s10, 0
    %p63 = por %p61, %p62
    %p64 = scmp.ne.s32.totalorder %s56, %s58
    %p65 = scmp.eq.s32.totalorder %s15, 1
    %p66 = por %p64, %p65
    %p67 = scmp.ne.s32.totalorder %s58, %s59
    %p68 = scmp.eq.s32.totalorder %s15, 0
    %p69 = por %p67, %p68
    %p70 = scmp.ne.s32.totalorder %s58, %s59
    %p71 = scmp.eq.s32.totalorder %s16, 1
    %p72 = por %p70, %p71
    %p74 = scmp.ne.s32.totalorder %s59, %s73
    %p75 = scmp.eq.s32.totalorder %s16, 0
    %p76 = por %p74, %p75
    %s78 = sadd.s32 %s77, 1
    %p81 = scmp.eq.s32.totalorder %s10, 1
    %p82 = scmp.ne.s32.totalorder %s77, %s79
    %p83 = scmp.eq.s32.totalorder %s10, 0
    %p84 = por %p82, %p83
    %p85 = scmp.ne.s32.totalorder %s77, %s79
    %p86 = scmp.eq.s32.totalorder %s15, 1
    %p87 = por %p85, %p86
    %p88 = scmp.ne.s32.totalorder %s79, %s80
    %p89 = scmp.eq.s32.totalorder %s15, 0
    %p90 = por %p88, %p89
    %p91 = scmp.ne.s32.totalorder %s79, %s80
    %p92 = scmp.eq.s32.totalorder %s16, 1
    %p93 = por %p91, %p92
    %p95 = scmp.ne.s32.totalorder %s80, %s94
    %p96 = scmp.eq.s32.totalorder %s16, 0
    %p97 = por %p95, %p96
    %s98 = ssub.s32 %s18, %s25
    %p99 = scmp.eq.s32.totalorder %s98, 0
    %s101 = sadd.s32 %s100, 1
    %s102 = scalar_select %p99, %s100, %s101
    %p105 = pneg %p99
    %p106 = scmp.eq.s32.totalorder %s10, 1
    %p107 = por %p105, %p106
    %p108 = scmp.ne.s32.totalorder %s100, %s103
    %p109 = scmp.eq.s32.totalorder %s10, 0
    %p110 = por %p108, %p109
    %p111 = scmp.ne.s32.totalorder %s100, %s103
    %p112 = scmp.eq.s32.totalorder %s15, 1
    %p113 = por %p111, %p112
    %p114 = scmp.ne.s32.totalorder %s103, %s104
    %p115 = scmp.eq.s32.totalorder %s15, 0
    %p116 = por %p114, %p115
    %p117 = scmp.ne.s32.totalorder %s103, %s104
    %p118 = scmp.eq.s32.totalorder %s16, 1
    %p119 = por %p117, %p118
    %p121 = scmp.ne.s32.totalorder %s104, %s120
    %p122 = scmp.eq.s32.totalorder %s16, 0
    %p123 = por %p121, %p122
    %s124 = ssub.s32 %s17, %s29
    %s125 = ssub.s32 %s18, %s25
    %s126 = sor.u32 %s124, %s125
    %p127 = scmp.eq.s32.totalorder %s126, 0
    %s129 = sadd.s32 %s128, 1
    %s130 = scalar_select %p127, %s128, %s129
    %p133 = pneg %p127
    %p134 = scmp.eq.s32.totalorder %s10, 1
    %p135 = por %p133, %p134
    %p136 = scmp.ne.s32.totalorder %s128, %s131
    %p137 = scmp.eq.s32.totalorder %s10, 0
    %p138 = por %p136, %p137
    %p139 = scmp.ne.s32.totalorder %s128, %s131
    %p140 = scmp.eq.s32.totalorder %s15, 1
    %p141 = por %p139, %p140
    %p142 = scmp.ne.s32.totalorder %s131, %s132
    %p143 = scmp.eq.s32.totalorder %s15, 0
    %p144 = por %p142, %p143
    %p145 = scmp.ne.s32.totalorder %s131, %s132
    %p146 = scmp.eq.s32.totalorder %s16, 1
    %p147 = por %p145, %p146
    %p149 = scmp.ne.s32.totalorder %s132, %s148
    %p150 = scmp.eq.s32.totalorder %s16, 0
    %p151 = por %p149, %p150
    %p152 = scmp.le.s32.totalorder 1, %s10
    %p153 = scmp.lt.s32.totalorder %s10, 3
    %p154 = pnand %p152, %p153
    %p155 = pneg %p154
    // Predicated region
    $region9: #{tpu_custom_call.1} parent=5 // pred_check
      _
    $region10: #{tpu_custom_call.1} parent=5 // pred_check_branch
      %157 = sbr.rel (%p154) target = $region12
    $region11: #{tpu_custom_call.1} parent=5 // pred_region
      %s158 = ssub.s32 %s10, 1
      // Predicated region
      $region13: #{tpu_custom_call.1} parent=11 // pred_check
        %p159 = pneg %p69
      $region14: #{tpu_custom_call.1} parent=11 // pred_check_branch
        %161 = sbr.rel (%p159) target = $region16
      $region15: #{tpu_custom_call.1} parent=11 // pred_region
        _
      $region16: #{tpu_custom_call.1} parent=11 // pred_fallthru
        _
      // Predicated region
      $region17: #{tpu_custom_call.1} parent=11 // pred_check
        %p162 = pneg %p90
      $region18: #{tpu_custom_call.1} parent=11 // pred_check_branch
        %164 = sbr.rel (%p162) target = $region20
      $region19: #{tpu_custom_call.1} parent=11 // pred_region
        _
      $region20: #{tpu_custom_call.1} parent=11 // pred_fallthru
        _
      // Predicated region
      $region21: #{tpu_custom_call.1} parent=11 // pred_check
        %p165 = pneg %p116
      $region22: #{tpu_custom_call.1} parent=11 // pred_check_branch
        %167 = sbr.rel (%p165) target = $region24
      $region23: #{tpu_custom_call.1} parent=11 // pred_region
        %p168 = scmp.lt.s32.totalorder %s20, 0
        %s169 = scalar_select %p168, %s20, 0
        %s170 = smul.addr %s169, 8
        %s171 = scalar_lea.vmem %s3, %s170
      $region24: #{tpu_custom_call.1} parent=11 // pred_fallthru
        _
    $region12: #{tpu_custom_call.1} parent=5 // pred_fallthru
      _
    %p172 = scmp.lt.s32.totalorder %s10, 2
    // Predicated region
    $region25: #{tpu_custom_call.1} parent=5 // pred_check
      %p173 = pneg %p172
    $region26: #{tpu_custom_call.1} parent=5 // pred_check_branch
      %175 = sbr.rel (%p173) target = $region28
    $region27: #{tpu_custom_call.1} parent=5 // pred_region
      // Predicated region
      $region29: #{tpu_custom_call.1} parent=27 // pred_check
        %p176 = pneg %p42
      $region30: #{tpu_custom_call.1} parent=27 // pred_check_branch
        %178 = sbr.rel (%p176) target = $region32
      $region31: #{tpu_custom_call.1} parent=27 // pred_region
        %s179 = smul.u32 32, %s17
        %p180 = scmp.lt.s32.totalorder %s179, 63
        %s181 = scalar_select %p180, %s179, 63
        %s182 = smul.addr %s181, 8
        %s183 = scalar_lea.vmem %s0, %s182
        %s184 = smul.u32 32, %s17
      $region32: #{tpu_custom_call.1} parent=27 // pred_fallthru
        _
    $region28: #{tpu_custom_call.1} parent=5 // pred_fallthru
      _
    %p185 = scmp.le.s32.totalorder 1, %s10
    %p186 = scmp.lt.s32.totalorder %s10, 3
    %p187 = pnand %p185, %p186
    %p188 = pneg %p187
    // Predicated region
    $region33: #{tpu_custom_call.1} parent=5 // pred_check
      _
    $region34: #{tpu_custom_call.1} parent=5 // pred_check_branch
      %190 = sbr.rel (%p187) target = $region36
    $region35: #{tpu_custom_call.1} parent=5 // pred_region
      %s191 = ssub.s32 %s10, 1
      %s192 = smul.u32 32, %s19
      %p193 = scmp.lt.s32.totalorder %s192, 63
      %s194 = scalar_select %p193, %s192, 63
      %s195 = smul.addr %s194, 8
      %s196 = scalar_lea.vmem %s0, %s195
      %p197 = pneg %p48
      %p198 = pneg %p45
      %p199 = pneg %p69
      %p200 = pneg %p66
      %p201 = pneg %p90
      %p202 = pneg %p87
      %p203 = scmp.lt.s32.totalorder %s20, 0
      %s204 = scalar_select %p203, %s20, 0
      %s205 = smul.addr %s204, 8
      %s206 = scalar_lea.vmem %s3, %s205
      %p207 = pneg %p116
      %p208 = pneg %p113
      %p209 = pneg %p144
      %p210 = pneg %p141
      %s211 = smul.u32 32, %s19
      %p212 = scmp.lt.s32.totalorder %s211, 63
      %s213 = scalar_select %p212, %s211, 63
      %p214 = scmp.lt.s32.totalorder %s20, 0
      %s215 = scalar_select %p214, %s20, 0
      %s216 = sadd.s32 %s215, %s213
      %s217 = smul.addr %s216, 8
      %s218 = scalar_lea.vmem %s4, %s217
      %s219 = smul.u32 32, %s19
      %p220 = scmp.lt.s32.totalorder %s219, 63
      %s221 = scalar_select %p220, %s219, 63
      %s222 = smul.addr %s221, 8
      %s223 = scalar_lea.vmem %s0, %s222
      %s224 = smul.u32 32, %s19
      %p225 = scmp.lt.s32.totalorder %s20, 0
      %s226 = scalar_select %p225, %s20, 0
      %s227 = smul.addr %s226, 8
      %s228 = scalar_lea.vmem %s3, %s227
      %s229 = smul.u32 32, %s19
      %p230 = scmp.lt.s32.totalorder %s229, 63
      %s231 = scalar_select %p230, %s229, 63
      %p232 = scmp.lt.s32.totalorder %s20, 0
      %s233 = scalar_select %p232, %s20, 0
      %s234 = sadd.s32 %s233, %s231
      %s235 = smul.addr %s234, 8
      %s236 = scalar_lea.vmem %s4, %s235
      %s237 = smul.u32 32, %s19
      %v238 = vld [vmem:[%s223] sm:$0xff]
      %v239 = vld [vmem:[%s223 + $0x8] sm:$0xff]
      %v240 = vld [vmem:[%s223 + $0x10] sm:$0xff]
      %v241 = vld [vmem:[%s223 + $0x18] sm:$0xff]
      %v242 = vld [vmem:[%s223 + $0x20] sm:$0xff]
      %v243 = vld [vmem:[%s223 + $0x28] sm:$0xff]
      %v244 = vld [vmem:[%s223 + $0x30] sm:$0xff]
      %v245 = vld [vmem:[%s223 + $0x38] sm:$0xff]
      %v246 = vld [vmem:[%s223 + $0x40] sm:$0xff]
      %v247 = vld [vmem:[%s223 + $0x48] sm:$0xff]
      %v248 = vld [vmem:[%s223 + $0x50] sm:$0xff]
      %v249 = vld [vmem:[%s223 + $0x58] sm:$0xff]
      %v250 = vld [vmem:[%s223 + $0x60] sm:$0xff]
      %v251 = vld [vmem:[%s223 + $0x68] sm:$0xff]
      %v252 = vld [vmem:[%s223 + $0x70] sm:$0xff]
      %v253 = vld [vmem:[%s223 + $0x78] sm:$0xff]
      %v254 = vld [vmem:[%s223 + $0x80] sm:$0xff]
      %v255 = vld [vmem:[%s223 + $0x88] sm:$0xff]
      %v256 = vld [vmem:[%s223 + $0x90] sm:$0xff]
      %v257 = vld [vmem:[%s223 + $0x98] sm:$0xff]
      %v258 = vld [vmem:[%s223 + $0xa0] sm:$0xff]
      %v259 = vld [vmem:[%s223 + $0xa8] sm:$0xff]
      %v260 = vld [vmem:[%s223 + $0xb0] sm:$0xff]
      %v261 = vld [vmem:[%s223 + $0xb8] sm:$0xff]
      %v262 = vld [vmem:[%s223 + $0xc0] sm:$0xff]
      %v263 = vld [vmem:[%s223 + $0xc8] sm:$0xff]
      %v264 = vld [vmem:[%s223 + $0xd0] sm:$0xff]
      %v265 = vld [vmem:[%s223 + $0xd8] sm:$0xff]
      %v266 = vld [vmem:[%s223 + $0xe0] sm:$0xff]
      %v267 = vld [vmem:[%s223 + $0xe8] sm:$0xff]
      %v268 = vld [vmem:[%s223 + $0xf0] sm:$0xff]
      %v269 = vld [vmem:[%s223 + $0xf8] sm:$0xff]
      %v270 = vld [vmem:[%s1] sm:$0xff]
      %v271 = vld [vmem:[%s1 + $0x8] sm:$0xff]
      %v272 = vld [vmem:[%s1 + $0x10] sm:$0xff]
      %v273 = vld [vmem:[%s1 + $0x18] sm:$0xff]
      %vm274 = vcmask 261120
      %v276 = vsel %vm274, %v238, 0
      %v279 = vsel %vm274, %v239, 0
      %v282 = vsel %vm274, %v240, 0
      %v285 = vsel %vm274, %v241, 0
      %v288 = vsel %vm274, %v242, 0
      %v291 = vsel %vm274, %v243, 0
      %v294 = vsel %vm274, %v244, 0
      %v297 = vsel %vm274, %v245, 0
      %v300 = vsel %vm274, %v246, 0
      %v303 = vsel %vm274, %v247, 0
      %v306 = vsel %vm274, %v248, 0
      %v309 = vsel %vm274, %v249, 0
      %v312 = vsel %vm274, %v250, 0
      %v315 = vsel %vm274, %v251, 0
      %v318 = vsel %vm274, %v252, 0
      %v321 = vsel %vm274, %v253, 0
      %v324 = vsel %vm274, %v254, 0
      %v327 = vsel %vm274, %v255, 0
      %v330 = vsel %vm274, %v256, 0
      %v333 = vsel %vm274, %v257, 0
      %v336 = vsel %vm274, %v258, 0
      %v339 = vsel %vm274, %v259, 0
      %v342 = vsel %vm274, %v260, 0
      %v345 = vsel %vm274, %v261, 0
      %v348 = vsel %vm274, %v262, 0
      %v351 = vsel %vm274, %v263, 0
      %v354 = vsel %vm274, %v264, 0
      %v357 = vsel %vm274, %v265, 0
      %v360 = vsel %vm274, %v266, 0
      %v363 = vsel %vm274, %v267, 0
      %v366 = vsel %vm274, %v268, 0
      %v369 = vsel %vm274, %v269, 0
      %371 = vmatprep.subr.mxu0 0.0
      %372 = vmatpush1.msra.mxu0 %v270
      %373 = vmatprep.subr.mxu0 0.0
      %374 = vmatpush1.msra.mxu0 %v271
      %375 = vmatprep.subr.mxu0 0.0
      %376 = vmatpush1.msra.mxu0 %v272
      %377 = vmatprep.subr.mxu0 0.0
      %378 = vmatpush1.msra.mxu0 %v273
      %379 = vmatprep.subr.mxu0 0.0
      %380 = vmatpush1.msra.mxu0 0.0
      %381 = vmatprep.subr.mxu0 0.0
      %382 = vmatpush1.msra.mxu0 0.0
      %383 = vmatprep.subr.mxu0 0.0
      %384 = vmatpush1.msra.mxu0 0.0
      %385 = vmatprep.subr.mxu0 0.0
      %386 = vmatpush1.msra.mxu0 0.0
      %387 = vmatprep.subr.mxu0 0.0
      %388 = vmatpush1.msra.mxu0 0.0
      %389 = vmatprep.subr.mxu0 0.0
      %390 = vmatpush1.msra.mxu0 0.0
      %391 = vmatprep.subr.mxu0 0.0
      %392 = vmatpush1.msra.mxu0 0.0
      %393 = vmatprep.subr.mxu0 0.0
      %394 = vmatpush1.msra.mxu0 0.0
      %395 = vmatprep.subr.mxu0 0.0
      %396 = vmatpush1.msra.mxu0 0.0
      %397 = vmatprep.subr.mxu0 0.0
      %398 = vmatpush1.msra.mxu0 0.0
      %399 = vmatprep.subr.mxu0 0.0
      %400 = vmatpush1.msra.mxu0 0.0
      %401 = vmatprep.subr.mxu0 0.0
      %402 = vmatpush1.msra.mxu0 0.0
      %403 = vmatprep.subr.mxu0 0.0
      %404 = vmatpush1.msra.mxu0 0.0
      %405 = vmatprep.subr.mxu0 0.0
      %406 = vmatpush1.msra.mxu0 0.0
      %407 = vmatprep.subr.mxu0 0.0
      %408 = vmatpush1.msra.mxu0 0.0
      %409 = vmatprep.subr.mxu0 0.0
      %410 = vmatpush1.msra.mxu0 0.0
      %411 = vmatprep.subr.mxu0 0.0
      %412 = vmatpush1.msra.mxu0 0.0
      %413 = vmatprep.subr.mxu0 0.0
      %414 = vmatpush1.msra.mxu0 0.0
      %415 = vmatprep.subr.mxu0 0.0
      %416 = vmatpush1.msra.mxu0 0.0
      %417 = vmatprep.subr.mxu0 0.0
      %418 = vmatpush1.msra.mxu0 0.0
      %419 = vmatprep.subr.mxu0 0.0
      %420 = vmatpush1.msra.mxu0 0.0
      %421 = vmatprep.subr.mxu0 0.0
      %422 = vmatpush1.msra.mxu0 0.0
      %423 = vmatprep.subr.mxu0 0.0
      %424 = vmatpush1.msra.mxu0 0.0
      %425 = vmatprep.subr.mxu0 0.0
      %426 = vmatpush1.msra.mxu0 0.0
      %427 = vmatprep.subr.mxu0 0.0
      %428 = vmatpush1.msra.mxu0 0.0
      %429 = vmatprep.subr.mxu0 0.0
      %430 = vmatpush1.msra.mxu0 0.0
      %431 = vmatprep.subr.mxu0 0.0
      %432 = vmatpush1.msra.mxu0 0.0
      %433 = vmatprep.subr.mxu0 0.0
      %434 = vmatpush1.msra.mxu0 0.0
      %435 = vmatprep.mubr.f32.mxu0 0.0
      %436 = vmatmul.mubr.f32.gmra.mrb[0].mxu0 %v276
      %v437 = vpop.f32.mrb[0].mxu0
      %v438 = vadd.f32 0.0, %v437
      %v439 = vpop.f32.mrb[0].mxu0
      %440 = vmatprep.mubr.f32.mxu0 0.0
      %441 = vmatmul.mubr.f32.gmra.mrb[0].mxu0 %v279
      %v442 = vpop.f32.mrb[0].mxu0
      %v443 = vadd.f32 0.0, %v442
      %v444 = vpop.f32.mrb[0].mxu0
      %445 = vmatprep.mubr.f32.mxu0 0.0
      %446 = vmatmul.mubr.f32.gmra.mrb[0].mxu0 %v282
      %v447 = vpop.f32.mrb[0].mxu0
      %v448 = vadd.f32 0.0, %v447
      %v449 = vpop.f32.mrb[0].mxu0
      %450 = vmatprep.mubr.f32.mxu0 0.0
      %451 = vmatmul.mubr.f32.gmra.mrb[0].mxu0 %v285
      %v452 = vpop.f32.mrb[0].mxu0
      %v453 = vadd.f32 0.0, %v452
      %v454 = vpop.f32.mrb[0].mxu0
      %455 = vmatprep.mubr.f32.mxu0 0.0
      %456 = vmatmul.mubr.f32.gmra.mrb[0].mxu0 %v288
      %v457 = vpop.f32.mrb[0].mxu0
      %v458 = vadd.f32 0.0, %v457
      %v459 = vpop.f32.mrb[0].mxu0
      %460 = vmatprep.mubr.f32.mxu0 0.0
      %461 = vmatmul.mubr.f32.gmra.mrb[0].mxu0 %v291
      %v462 = vpop.f32.mrb[0].mxu0
      %v463 = vadd.f32 0.0, %v462
      %v464 = vpop.f32.mrb[0].mxu0
      %465 = vmatprep.mubr.f32.mxu0 0.0
      %466 = vmatmul.mubr.f32.gmra.mrb[0].mxu0 %v294
      %v467 = vpop.f32.mrb[0].mxu0
      %v468 = vadd.f32 0.0, %v467
      %v469 = vpop.f32.mrb[0].mxu0
      %470 = vmatprep.mubr.f32.mxu0 0.0
      %471 = vmatmul.mubr.f32.gmra.mrb[0].mxu0 %v297
      %v472 = vpop.f32.mrb[0].mxu0
      %v473 = vadd.f32 0.0, %v472
      %v474 = vpop.f32.mrb[0].mxu0
      %475 = vmatprep.mubr.f32.mxu0 0.0
      %476 = vmatmul.mubr.f32.gmra.mrb[0].mxu0 %v300
      %v477 = vpop.f32.mrb[0].mxu0
      %v478 = vadd.f32 0.0, %v477
      %v479 = vpop.f32.mrb[0].mxu0
      %480 = vmatprep.mubr.f32.mxu0 0.0
      %481 = vmatmul.mubr.f32.gmra.mrb[0].mxu0 %v303
      %v482 = vpop.f32.mrb[0].mxu0
      %v483 = vadd.f32 0.0, %v482
      %v484 = vpop.f32.mrb[0].mxu0
      %485 = vmatprep.mubr.f32.mxu0 0.0
      %486 = vmatmul.mubr.f32.gmra.mrb[0].mxu0 %v306
      %v487 = vpop.f32.mrb[0].mxu0
      %v488 = vadd.f32 0.0, %v487
      %v489 = vpop.f32.mrb[0].mxu0
      %490 = vmatprep.mubr.f32.mxu0 0.0
      %491 = vmatmul.mubr.f32.gmra.mrb[0].mxu0 %v309
      %v492 = vpop.f32.mrb[0].mxu0
      %v493 = vadd.f32 0.0, %v492
      %v494 = vpop.f32.mrb[0].mxu0
      %495 = vmatprep.mubr.f32.mxu0 0.0
      %496 = vmatmul.mubr.f32.gmra.mrb[0].mxu0 %v312
      %v497 = vpop.f32.mrb[0].mxu0
      %v498 = vadd.f32 0.0, %v497
      %v499 = vpop.f32.mrb[0].mxu0
      %500 = vmatprep.mubr.f32.mxu0 0.0
      %501 = vmatmul.mubr.f32.gmra.mrb[0].mxu0 %v315
      %v502 = vpop.f32.mrb[0].mxu0
      %v503 = vadd.f32 0.0, %v502
      %v504 = vpop.f32.mrb[0].mxu0
      %505 = vmatprep.mubr.f32.mxu0 0.0
      %506 = vmatmul.mubr.f32.gmra.mrb[0].mxu0 %v318
      %v507 = vpop.f32.mrb[0].mxu0
      %v508 = vadd.f32 0.0, %v507
      %v509 = vpop.f32.mrb[0].mxu0
      %510 = vmatprep.mubr.f32.mxu0 0.0
      %511 = vmatmul.mubr.f32.gmra.mrb[0].mxu0 %v321
      %v512 = vpop.f32.mrb[0].mxu0
      %v513 = vadd.f32 0.0, %v512
      %v514 = vpop.f32.mrb[0].mxu0
      %515 = vmatprep.mubr.f32.mxu0 0.0
      %516 = vmatmul.mubr.f32.gmra.mrb[0].mxu0 %v324
      %v517 = vpop.f32.mrb[0].mxu0
      %v518 = vadd.f32 0.0, %v517
      %v519 = vpop.f32.mrb[0].mxu0
      %520 = vmatprep.mubr.f32.mxu0 0.0
      %521 = vmatmul.mubr.f32.gmra.mrb[0].mxu0 %v327
      %v522 = vpop.f32.mrb[0].mxu0
      %v523 = vadd.f32 0.0, %v522
      %v524 = vpop.f32.mrb[0].mxu0
      %525 = vmatprep.mubr.f32.mxu0 0.0
      %526 = vmatmul.mubr.f32.gmra.mrb[0].mxu0 %v330
      %v527 = vpop.f32.mrb[0].mxu0
      %v528 = vadd.f32 0.0, %v527
      %v529 = vpop.f32.mrb[0].mxu0
      %530 = vmatprep.mubr.f32.mxu0 0.0
      %531 = vmatmul.mubr.f32.gmra.mrb[0].mxu0 %v333
      %v532 = vpop.f32.mrb[0].mxu0
      %v533 = vadd.f32 0.0, %v532
      %v534 = vpop.f32.mrb[0].mxu0
      %535 = vmatprep.mubr.f32.mxu0 0.0
      %536 = vmatmul.mubr.f32.gmra.mrb[0].mxu0 %v336
      %v537 = vpop.f32.mrb[0].mxu0
      %v538 = vadd.f32 0.0, %v537
      %v539 = vpop.f32.mrb[0].mxu0
      %540 = vmatprep.mubr.f32.mxu0 0.0
      %541 = vmatmul.mubr.f32.gmra.mrb[0].mxu0 %v339
      %v542 = vpop.f32.mrb[0].mxu0
      %v543 = vadd.f32 0.0, %v542
      %v544 = vpop.f32.mrb[0].mxu0
      %545 = vmatprep.mubr.f32.mxu0 0.0
      %546 = vmatmul.mubr.f32.gmra.mrb[0].mxu0 %v342
      %v547 = vpop.f32.mrb[0].mxu0
      %v548 = vadd.f32 0.0, %v547
      %v549 = vpop.f32.mrb[0].mxu0
      %550 = vmatprep.mubr.f32.mxu0 0.0
      %551 = vmatmul.mubr.f32.gmra.mrb[0].mxu0 %v345
      %v552 = vpop.f32.mrb[0].mxu0
      %v553 = vadd.f32 0.0, %v552
      %v554 = vpop.f32.mrb[0].mxu0
      %555 = vmatprep.mubr.f32.mxu0 0.0
      %556 = vmatmul.mubr.f32.gmra.mrb[0].mxu0 %v348
      %v557 = vpop.f32.mrb[0].mxu0
      %v558 = vadd.f32 0.0, %v557
      %v559 = vpop.f32.mrb[0].mxu0
      %560 = vmatprep.mubr.f32.mxu0 0.0
      %561 = vmatmul.mubr.f32.gmra.mrb[0].mxu0 %v351
      %v562 = vpop.f32.mrb[0].mxu0
      %v563 = vadd.f32 0.0, %v562
      %v564 = vpop.f32.mrb[0].mxu0
      %565 = vmatprep.mubr.f32.mxu0 0.0
      %566 = vmatmul.mubr.f32.gmra.mrb[0].mxu0 %v354
      %v567 = vpop.f32.mrb[0].mxu0
      %v568 = vadd.f32 0.0, %v567
      %v569 = vpop.f32.mrb[0].mxu0
      %570 = vmatprep.mubr.f32.mxu0 0.0
      %571 = vmatmul.mubr.f32.gmra.mrb[0].mxu0 %v357
      %v572 = vpop.f32.mrb[0].mxu0
      %v573 = vadd.f32 0.0, %v572
      %v574 = vpop.f32.mrb[0].mxu0
      %575 = vmatprep.mubr.f32.mxu0 0.0
      %576 = vmatmul.mubr.f32.gmra.mrb[0].mxu0 %v360
      %v577 = vpop.f32.mrb[0].mxu0
      %v578 = vadd.f32 0.0, %v577
      %v579 = vpop.f32.mrb[0].mxu0
      %580 = vmatprep.mubr.f32.mxu0 0.0
      %581 = vmatmul.mubr.f32.gmra.mrb[0].mxu0 %v363
      %v582 = vpop.f32.mrb[0].mxu0
      %v583 = vadd.f32 0.0, %v582
      %v584 = vpop.f32.mrb[0].mxu0
      %585 = vmatprep.mubr.f32.mxu0 0.0
      %586 = vmatmul.mubr.f32.gmra.mrb[0].mxu0 %v366
      %v587 = vpop.f32.mrb[0].mxu0
      %v588 = vadd.f32 0.0, %v587
      %v589 = vpop.f32.mrb[0].mxu0
      %590 = vmatprep.mubr.f32.mxu0 0.0
      %591 = vmatmul.mubr.f32.gmra.mrb[0].mxu0 %v369
      %v592 = vpop.f32.mrb[0].mxu0
      %v593 = vadd.f32 0.0, %v592
      %v594 = vpop.f32.mrb[0].mxu0
      %595 = vdwg.mxu0
      %v596 = vld [vmem:[%s2] sm:$0xff]
      %v597 = vld [vmem:[%s2 + $0x8] sm:$0xff]
      %v598 = vld [vmem:[%s2 + $0x10] sm:$0xff]
      %v599 = vld [vmem:[%s2 + $0x18] sm:$0xff]
      %v600 = vld [vmem:[%s2 + $0x20] sm:$0xff]
      %v601 = vld [vmem:[%s2 + $0x28] sm:$0xff]
      %v602 = vld [vmem:[%s2 + $0x30] sm:$0xff]
      %v603 = vld [vmem:[%s2 + $0x38] sm:$0xff]
      %v604 = vmul.f32 %v438, %v596
      %v605 = vmul.f32 %v443, %v597
      %v606 = vmul.f32 %v448, %v598
      %v607 = vmul.f32 %v453, %v599
      %v608 = vmul.f32 %v458, %v600
      %v609 = vmul.f32 %v463, %v601
      %v610 = vmul.f32 %v468, %v602
      %v611 = vmul.f32 %v473, %v603
      %v612 = vmul.f32 %v478, %v596
      %v613 = vmul.f32 %v483, %v597
      %v614 = vmul.f32 %v488, %v598
      %v615 = vmul.f32 %v493, %v599
      %v616 = vmul.f32 %v498, %v600
      %v617 = vmul.f32 %v503, %v601
      %v618 = vmul.f32 %v508, %v602
      %v619 = vmul.f32 %v513, %v603
      %v620 = vmul.f32 %v518, %v596
      %v621 = vmul.f32 %v523, %v597
      %v622 = vmul.f32 %v528, %v598
      %v623 = vmul.f32 %v533, %v599
      %v624 = vmul.f32 %v538, %v600
      %v625 = vmul.f32 %v543, %v601
      %v626 = vmul.f32 %v548, %v602
      %v627 = vmul.f32 %v553, %v603
      %v628 = vmul.f32 %v558, %v596
      %v629 = vmul.f32 %v563, %v597
      %v630 = vmul.f32 %v568, %v598
      %v631 = vmul.f32 %v573, %v599
      %v632 = vmul.f32 %v578, %v600
      %v633 = vmul.f32 %v583, %v601
      %v634 = vmul.f32 %v588, %v602
      %v635 = vmul.f32 %v593, %v603
      %v636 = vld [vmem:[%s228] sm:$0xff]
      %v637 = vld [vmem:[%s228 + $0x8] sm:$0xff]
      %v638 = vld [vmem:[%s228 + $0x10] sm:$0xff]
      %v639 = vld [vmem:[%s228 + $0x18] sm:$0xff]
      %v640 = vld [vmem:[%s228 + $0x20] sm:$0xff]
      %v641 = vld [vmem:[%s228 + $0x28] sm:$0xff]
      %v642 = vld [vmem:[%s228 + $0x30] sm:$0xff]
      %v643 = vld [vmem:[%s228 + $0x38] sm:$0xff]
      %v644 = vld [vmem:[%s228 + $0x40] sm:$0xff]
      %v645 = vld [vmem:[%s228 + $0x48] sm:$0xff]
      %v646 = vld [vmem:[%s228 + $0x50] sm:$0xff]
      %v647 = vld [vmem:[%s228 + $0x58] sm:$0xff]
      %v648 = vld [vmem:[%s228 + $0x60] sm:$0xff]
      %v649 = vld [vmem:[%s228 + $0x68] sm:$0xff]
      %v650 = vld [vmem:[%s228 + $0x70] sm:$0xff]
      %v651 = vld [vmem:[%s228 + $0x78] sm:$0xff]
      %652 = vmatprep.subr.mxu0 0.0
      %653 = vmatpush1.msra.mxu0 %v636
      %654 = vmatprep.subr.mxu0 0.0
      %655 = vmatpush1.msra.mxu0 %v637
      %656 = vmatprep.subr.mxu0 0.0
      %657 = vmatpush1.msra.mxu0 %v638
      %658 = vmatprep.subr.mxu0 0.0
      %659 = vmatpush1.msra.mxu0 %v639
      %660 = vmatprep.subr.mxu0 0.0
      %661 = vmatpush1.msra.mxu0 %v640
      %662 = vmatprep.subr.mxu0 0.0
      %663 = vmatpush1.msra.mxu0 %v641
      %664 = vmatprep.subr.mxu0 0.0
      %665 = vmatpush1.msra.mxu0 %v642
      %666 = vmatprep.subr.mxu0 0.0
      %667 = vmatpush1.msra.mxu0 %v643
      %668 = vmatprep.subr.mxu0 0.0
      %669 = vmatpush1.msra.mxu0 %v644
      %670 = vmatprep.subr.mxu0 0.0
      %671 = vmatpush1.msra.mxu0 %v645
      %672 = vmatprep.subr.mxu0 0.0
      %673 = vmatpush1.msra.mxu0 %v646
      %674 = vmatprep.subr.mxu0 0.0
      %675 = vmatpush1.msra.mxu0 %v647
      %676 = vmatprep.subr.mxu0 0.0
      %677 = vmatpush1.msra.mxu0 %v648
      %678 = vmatprep.subr.mxu0 0.0
      %679 = vmatpush1.msra.mxu0 %v649
      %680 = vmatprep.subr.mxu0 0.0
      %681 = vmatpush1.msra.mxu0 %v650
      %682 = vmatprep.subr.mxu0 0.0
      %683 = vmatpush1.msra.mxu0 %v651
      %684 = vmatprep.subr.mxu0 0.0
      %685 = vmatpush1.msra.mxu0 0.0
      %686 = vmatprep.subr.mxu0 0.0
      %687 = vmatpush1.msra.mxu0 0.0
      %688 = vmatprep.subr.mxu0 0.0
      %689 = vmatpush1.msra.mxu0 0.0
      %690 = vmatprep.subr.mxu0 0.0
      %691 = vmatpush1.msra.mxu0 0.0
      %692 = vmatprep.subr.mxu0 0.0
      %693 = vmatpush1.msra.mxu0 0.0
      %694 = vmatprep.subr.mxu0 0.0
      %695 = vmatpush1.msra.mxu0 0.0
      %696 = vmatprep.subr.mxu0 0.0
      %697 = vmatpush1.msra.mxu0 0.0
      %698 = vmatprep.subr.mxu0 0.0
      %699 = vmatpush1.msra.mxu0 0.0
      %700 = vmatprep.subr.mxu0 0.0
      %701 = vmatpush1.msra.mxu0 0.0
      %702 = vmatprep.subr.mxu0 0.0
      %703 = vmatpush1.msra.mxu0 0.0
      %704 = vmatprep.subr.mxu0 0.0
      %705 = vmatpush1.msra.mxu0 0.0
      %706 = vmatprep.subr.mxu0 0.0
      %707 = vmatpush1.msra.mxu0 0.0
      %708 = vmatprep.subr.mxu0 0.0
      %709 = vmatpush1.msra.mxu0 0.0
      %710 = vmatprep.subr.mxu0 0.0
      %711 = vmatpush1.msra.mxu0 0.0
      %712 = vmatprep.subr.mxu0 0.0
      %713 = vmatpush1.msra.mxu0 0.0
      %714 = vmatprep.subr.mxu0 0.0
      %715 = vmatpush1.msra.mxu0 0.0
      %716 = vmatprep.mubr.f32.mxu0 0.0
      %717 = vmatmul.mubr.f32.gmra.mrb[0].mxu0 %v604
      %v718 = vpop.f32.mrb[0].mxu0
      %v719 = vadd.f32 0.0, %v718
      %v720 = vpop.f32.mrb[0].mxu0
      %721 = vmatprep.mubr.f32.mxu0 0.0
      %722 = vmatmul.mubr.f32.gmra.mrb[0].mxu0 %v605
      %v723 = vpop.f32.mrb[0].mxu0
      %v724 = vadd.f32 0.0, %v723
      %v725 = vpop.f32.mrb[0].mxu0
      %726 = vmatprep.mubr.f32.mxu0 0.0
      %727 = vmatmul.mubr.f32.gmra.mrb[0].mxu0 %v606
      %v728 = vpop.f32.mrb[0].mxu0
      %v729 = vadd.f32 0.0, %v728
      %v730 = vpop.f32.mrb[0].mxu0
      %731 = vmatprep.mubr.f32.mxu0 0.0
      %732 = vmatmul.mubr.f32.gmra.mrb[0].mxu0 %v607
      %v733 = vpop.f32.mrb[0].mxu0
      %v734 = vadd.f32 0.0, %v733
      %v735 = vpop.f32.mrb[0].mxu0
      %736 = vmatprep.mubr.f32.mxu0 0.0
      %737 = vmatmul.mubr.f32.gmra.mrb[0].mxu0 %v608
      %v738 = vpop.f32.mrb[0].mxu0
      %v739 = vadd.f32 0.0, %v738
      %v740 = vpop.f32.mrb[0].mxu0
      %741 = vmatprep.mubr.f32.mxu0 0.0
      %742 = vmatmul.mubr.f32.gmra.mrb[0].mxu0 %v609
      %v743 = vpop.f32.mrb[0].mxu0
      %v744 = vadd.f32 0.0, %v743
      %v745 = vpop.f32.mrb[0].mxu0
      %746 = vmatprep.mubr.f32.mxu0 0.0
      %747 = vmatmul.mubr.f32.gmra.mrb[0].mxu0 %v610
      %v748 = vpop.f32.mrb[0].mxu0
      %v749 = vadd.f32 0.0, %v748
      %v750 = vpop.f32.mrb[0].mxu0
      %751 = vmatprep.mubr.f32.mxu0 0.0
      %752 = vmatmul.mubr.f32.gmra.mrb[0].mxu0 %v611
      %v753 = vpop.f32.mrb[0].mxu0
      %v754 = vadd.f32 0.0, %v753
      %v755 = vpop.f32.mrb[0].mxu0
      %756 = vmatprep.mubr.f32.mxu0 0.0
      %757 = vmatmul.mubr.f32.gmra.mrb[0].mxu0 %v612
      %v758 = vpop.f32.mrb[0].mxu0
      %v759 = vadd.f32 0.0, %v758
      %v760 = vpop.f32.mrb[0].mxu0
      %761 = vmatprep.mubr.f32.mxu0 0.0
      %762 = vmatmul.mubr.f32.gmra.mrb[0].mxu0 %v613
      %v763 = vpop.f32.mrb[0].mxu0
      %v764 = vadd.f32 0.0, %v763
      %v765 = vpop.f32.mrb[0].mxu0
      %766 = vmatprep.mubr.f32.mxu0 0.0
      %767 = vmatmul.mubr.f32.gmra.mrb[0].mxu0 %v614
      %v768 = vpop.f32.mrb[0].mxu0
      %v769 = vadd.f32 0.0, %v768
      %v770 = vpop.f32.mrb[0].mxu0
      %771 = vmatprep.mubr.f32.mxu0 0.0
      %772 = vmatmul.mubr.f32.gmra.mrb[0].mxu0 %v615
      %v773 = vpop.f32.mrb[0].mxu0
      %v774 = vadd.f32 0.0, %v773
      %v775 = vpop.f32.mrb[0].mxu0
      %776 = vmatprep.mubr.f32.mxu0 0.0
      %777 = vmatmul.mubr.f32.gmra.mrb[0].mxu0 %v616
      %v778 = vpop.f32.mrb[0].mxu0
      %v779 = vadd.f32 0.0, %v778
      %v780 = vpop.f32.mrb[0].mxu0
      %781 = vmatprep.mubr.f32.mxu0 0.0
      %782 = vmatmul.mubr.f32.gmra.mrb[0].mxu0 %v617
      %v783 = vpop.f32.mrb[0].mxu0
      %v784 = vadd.f32 0.0, %v783
      %v785 = vpop.f32.mrb[0].mxu0
      %786 = vmatprep.mubr.f32.mxu0 0.0
      %787 = vmatmul.mubr.f32.gmra.mrb[0].mxu0 %v618
      %v788 = vpop.f32.mrb[0].mxu0
      %v789 = vadd.f32 0.0, %v788
      %v790 = vpop.f32.mrb[0].mxu0
      %791 = vmatprep.mubr.f32.mxu0 0.0
      %792 = vmatmul.mubr.f32.gmra.mrb[0].mxu0 %v619
      %v793 = vpop.f32.mrb[0].mxu0
      %v794 = vadd.f32 0.0, %v793
      %v795 = vpop.f32.mrb[0].mxu0
      %796 = vmatprep.mubr.f32.mxu0 0.0
      %797 = vmatmul.mubr.f32.gmra.mrb[0].mxu0 %v620
      %v798 = vpop.f32.mrb[0].mxu0
      %v799 = vadd.f32 0.0, %v798
      %v800 = vpop.f32.mrb[0].mxu0
      %801 = vmatprep.mubr.f32.mxu0 0.0
      %802 = vmatmul.mubr.f32.gmra.mrb[0].mxu0 %v621
      %v803 = vpop.f32.mrb[0].mxu0
      %v804 = vadd.f32 0.0, %v803
      %v805 = vpop.f32.mrb[0].mxu0
      %806 = vmatprep.mubr.f32.mxu0 0.0
      %807 = vmatmul.mubr.f32.gmra.mrb[0].mxu0 %v622
      %v808 = vpop.f32.mrb[0].mxu0
      %v809 = vadd.f32 0.0, %v808
      %v810 = vpop.f32.mrb[0].mxu0
      %811 = vmatprep.mubr.f32.mxu0 0.0
      %812 = vmatmul.mubr.f32.gmra.mrb[0].mxu0 %v623
      %v813 = vpop.f32.mrb[0].mxu0
      %v814 = vadd.f32 0.0, %v813
      %v815 = vpop.f32.mrb[0].mxu0
      %816 = vmatprep.mubr.f32.mxu0 0.0
      %817 = vmatmul.mubr.f32.gmra.mrb[0].mxu0 %v624
      %v818 = vpop.f32.mrb[0].mxu0
      %v819 = vadd.f32 0.0, %v818
      %v820 = vpop.f32.mrb[0].mxu0
      %821 = vmatprep.mubr.f32.mxu0 0.0
      %822 = vmatmul.mubr.f32.gmra.mrb[0].mxu0 %v625
      %v823 = vpop.f32.mrb[0].mxu0
      %v824 = vadd.f32 0.0, %v823
      %v825 = vpop.f32.mrb[0].mxu0
      %826 = vmatprep.mubr.f32.mxu0 0.0
      %827 = vmatmul.mubr.f32.gmra.mrb[0].mxu0 %v626
      %v828 = vpop.f32.mrb[0].mxu0
      %v829 = vadd.f32 0.0, %v828
      %v830 = vpop.f32.mrb[0].mxu0
      %831 = vmatprep.mubr.f32.mxu0 0.0
      %832 = vmatmul.mubr.f32.gmra.mrb[0].mxu0 %v627
      %v833 = vpop.f32.mrb[0].mxu0
      %v834 = vadd.f32 0.0, %v833
      %v835 = vpop.f32.mrb[0].mxu0
      %836 = vmatprep.mubr.f32.mxu0 0.0
      %837 = vmatmul.mubr.f32.gmra.mrb[0].mxu0 %v628
      %v838 = vpop.f32.mrb[0].mxu0
      %v839 = vadd.f32 0.0, %v838
      %v840 = vpop.f32.mrb[0].mxu0
      %841 = vmatprep.mubr.f32.mxu0 0.0
      %842 = vmatmul.mubr.f32.gmra.mrb[0].mxu0 %v629
      %v843 = vpop.f32.mrb[0].mxu0
      %v844 = vadd.f32 0.0, %v843
      %v845 = vpop.f32.mrb[0].mxu0
      %846 = vmatprep.mubr.f32.mxu0 0.0
      %847 = vmatmul.mubr.f32.gmra.mrb[0].mxu0 %v630
      %v848 = vpop.f32.mrb[0].mxu0
      %v849 = vadd.f32 0.0, %v848
      %v850 = vpop.f32.mrb[0].mxu0
      %851 = vmatprep.mubr.f32.mxu0 0.0
      %852 = vmatmul.mubr.f32.gmra.mrb[0].mxu0 %v631
      %v853 = vpop.f32.mrb[0].mxu0
      %v854 = vadd.f32 0.0, %v853
      %v855 = vpop.f32.mrb[0].mxu0
      %856 = vmatprep.mubr.f32.mxu0 0.0
      %857 = vmatmul.mubr.f32.gmra.mrb[0].mxu0 %v632
      %v858 = vpop.f32.mrb[0].mxu0
      %v859 = vadd.f32 0.0, %v858
      %v860 = vpop.f32.mrb[0].mxu0
      %861 = vmatprep.mubr.f32.mxu0 0.0
      %862 = vmatmul.mubr.f32.gmra.mrb[0].mxu0 %v633
      %v863 = vpop.f32.mrb[0].mxu0
      %v864 = vadd.f32 0.0, %v863
      %v865 = vpop.f32.mrb[0].mxu0
      %866 = vmatprep.mubr.f32.mxu0 0.0
      %867 = vmatmul.mubr.f32.gmra.mrb[0].mxu0 %v634
      %v868 = vpop.f32.mrb[0].mxu0
      %v869 = vadd.f32 0.0, %v868
      %v870 = vpop.f32.mrb[0].mxu0
      %871 = vmatprep.mubr.f32.mxu0 0.0
      %872 = vmatmul.mubr.f32.gmra.mrb[0].mxu0 %v635
      %v873 = vpop.f32.mrb[0].mxu0
      %v874 = vadd.f32 0.0, %v873
      %v875 = vpop.f32.mrb[0].mxu0
      %876 = vdwg.mxu0
      %vm877 = vcmask 523264
      %878 = vst.msk [vmem:[%s236] sm:$0xff] %vm877, %v719
      %879 = vst.msk [vmem:[%s236 + $0x8] sm:$0xff] %vm877, %v724
      %880 = vst.msk [vmem:[%s236 + $0x10] sm:$0xff] %vm877, %v729
      %881 = vst.msk [vmem:[%s236 + $0x18] sm:$0xff] %vm877, %v734
      %882 = vst.msk [vmem:[%s236 + $0x20] sm:$0xff] %vm877, %v739
      %883 = vst.msk [vmem:[%s236 + $0x28] sm:$0xff] %vm877, %v744
      %884 = vst.msk [vmem:[%s236 + $0x30] sm:$0xff] %vm877, %v749
      %885 = vst.msk [vmem:[%s236 + $0x38] sm:$0xff] %vm877, %v754
      %886 = vst.msk [vmem:[%s236 + $0x40] sm:$0xff] %vm877, %v759
      %887 = vst.msk [vmem:[%s236 + $0x48] sm:$0xff] %vm877, %v764
      %888 = vst.msk [vmem:[%s236 + $0x50] sm:$0xff] %vm877, %v769
      %889 = vst.msk [vmem:[%s236 + $0x58] sm:$0xff] %vm877, %v774
      %890 = vst.msk [vmem:[%s236 + $0x60] sm:$0xff] %vm877, %v779
      %891 = vst.msk [vmem:[%s236 + $0x68] sm:$0xff] %vm877, %v784
      %892 = vst.msk [vmem:[%s236 + $0x70] sm:$0xff] %vm877, %v789
      %893 = vst.msk [vmem:[%s236 + $0x78] sm:$0xff] %vm877, %v794
      %894 = vst.msk [vmem:[%s236 + $0x80] sm:$0xff] %vm877, %v799
      %895 = vst.msk [vmem:[%s236 + $0x88] sm:$0xff] %vm877, %v804
      %896 = vst.msk [vmem:[%s236 + $0x90] sm:$0xff] %vm877, %v809
      %897 = vst.msk [vmem:[%s236 + $0x98] sm:$0xff] %vm877, %v814
      %898 = vst.msk [vmem:[%s236 + $0xa0] sm:$0xff] %vm877, %v819
      %899 = vst.msk [vmem:[%s236 + $0xa8] sm:$0xff] %vm877, %v824
      %900 = vst.msk [vmem:[%s236 + $0xb0] sm:$0xff] %vm877, %v829
      %901 = vst.msk [vmem:[%s236 + $0xb8] sm:$0xff] %vm877, %v834
      %902 = vst.msk [vmem:[%s236 + $0xc0] sm:$0xff] %vm877, %v839
      %903 = vst.msk [vmem:[%s236 + $0xc8] sm:$0xff] %vm877, %v844
      %904 = vst.msk [vmem:[%s236 + $0xd0] sm:$0xff] %vm877, %v849
      %905 = vst.msk [vmem:[%s236 + $0xd8] sm:$0xff] %vm877, %v854
      %906 = vst.msk [vmem:[%s236 + $0xe0] sm:$0xff] %vm877, %v859
      %907 = vst.msk [vmem:[%s236 + $0xe8] sm:$0xff] %vm877, %v864
      %908 = vst.msk [vmem:[%s236 + $0xf0] sm:$0xff] %vm877, %v869
      %909 = vst.msk [vmem:[%s236 + $0xf8] sm:$0xff] %vm877, %v874
      %s910 = smul.u32 32, %s19
      %p911 = scmp.lt.s32.totalorder %s910, 63
      %s912 = scalar_select %p911, %s910, 63
      %p913 = scmp.lt.s32.totalorder %s20, 0
      %s914 = scalar_select %p913, %s20, 0
      %s915 = sadd.s32 %s914, %s912
      %s916 = smul.addr %s915, 8
      %s917 = scalar_lea.vmem %s4, %s916
      // Predicated region
      $region37: #{tpu_custom_call.1} parent=35 // pred_check
        %p918 = pneg %p141
      $region38: #{tpu_custom_call.1} parent=35 // pred_check_branch
        %920 = sbr.rel (%p918) target = $region40
      $region39: #{tpu_custom_call.1} parent=35 // pred_region
        %s921 = smul.u32 32, %s19
      $region40: #{tpu_custom_call.1} parent=35 // pred_fallthru
        _
    $region36: #{tpu_custom_call.1} parent=5 // pred_fallthru
      _
    %p922 = scmp.le.s32.totalorder 2, %s10
    // Predicated region
    $region41: #{tpu_custom_call.1} parent=5 // pred_check
      %p923 = pneg %p922
    $region42: #{tpu_custom_call.1} parent=5 // pred_check_branch
      %925 = sbr.rel (%p923) target = $region44
    $region43: #{tpu_custom_call.1} parent=5 // pred_region
      %s926 = ssub.s32 %s10, 2
      // Predicated region
      $region45: #{tpu_custom_call.1} parent=43 // pred_check
        %p927 = pneg %p147
      $region46: #{tpu_custom_call.1} parent=43 // pred_check_branch
        %929 = sbr.rel (%p927) target = $region48
      $region47: #{tpu_custom_call.1} parent=43 // pred_region
        %s930 = smul.u32 32, %s21
        %p931 = scmp.lt.s32.totalorder %s930, 63
        %s932 = scalar_select %p931, %s930, 63
        %p933 = scmp.lt.s32.totalorder %s22, 0
        %s934 = scalar_select %p933, %s22, 0
        %s935 = sadd.s32 %s934, %s932
        %s936 = smul.addr %s935, 8
        %s937 = scalar_lea.vmem %s4, %s936
      $region48: #{tpu_custom_call.1} parent=43 // pred_fallthru
        _
    $region44: #{tpu_custom_call.1} parent=5 // pred_fallthru
      _
  $region6: #{tpu_custom_call.1} parent=0 // loop_footer
    %s14 = sadd.s32 1, %s10
  $region7: #{tpu_custom_call.1} parent=0 // loop_footer_branch
    %9 = sbr.rel target = $region3
  $region8: #{tpu_custom_call.1} parent=0 // loop_exit
    _

</llo_original>
